<compile_context>
chip_gen: v7x
topology: tpu7x:2x2x1
jax: 0.10.0
libtpu: 0.0.40
codegen_flags: <defaults>
</compile_context>

<pallas_src>
import functools

import jax
import jax.numpy as jnp
from jax.experimental import pallas as pl
from jax.experimental.pallas import tpu as pltpu


def _convblock_kernel(x_ref, w_ref, b_ref, alpha_ref, o_ref, xpad_ref, *,
                      h, w, pad, kh_size, kw_size):
    # x_ref:     (1, Cin, H*W)         VMEM, f32   (one image per grid step)
    # w_ref:     (KH*KW, Cout, Cin)    VMEM, bf16  (resident across grid)
    # b_ref:     (Cout, 1)             VMEM, f32
    # alpha_ref: (1,)                  SMEM, f32   (PReLU shared alpha)
    # o_ref:     (1, Cout, Ho*Wo)      VMEM, f32   (lane-dense output)
    # xpad_ref:  (Cin, Hp*Wp)          VMEM scratch, bf16 (padded, flat image)
    cin = x_ref.shape[1]
    cout = o_ref.shape[1]
    hp = h + 2 * pad
    wp = w + 2 * pad
    ho = hp - kh_size + 1
    wo = wp - kw_size + 1
    # Exact flat span needed so the last tap slice stays in bounds.
    span = (ho - 1) * wp + wo
    zdt = xpad_ref.dtype

    # ---- build the zero-padded, width-flattened image in VMEM (bf16) ----
    # Only the halo strips are zeroed; interior rows are copied (and cast)
    # straight from the input block.
    if pad == 0:
        xpad_ref[...] = x_ref[0].astype(zdt)
    else:
        # top strip + left halo of the first interior row
        xpad_ref[:, 0:pad * wp + pad] = jnp.zeros((cin, pad * wp + pad), zdt)
        # right halo of the last interior row + bottom strip
        xpad_ref[:, (pad + h) * wp - pad:hp * wp] = jnp.zeros(
            (cin, pad * wp + pad), zdt)
        for y in range(h):
            dst = (pad + y) * wp + pad
            xpad_ref[:, dst:dst + w] = x_ref[0, :, y * w:(y + 1) * w].astype(zdt)
            if y + 1 < h:
                # gap = right halo of row y + left halo of row y + 1
                xpad_ref[:, dst + w:dst + w + 2 * pad] = jnp.zeros(
                    (cin, 2 * pad), zdt)

    # ---- conv: KH*KW accumulating (Cout,Cin) x (Cin,span) MXU matmuls ----
    # RHS for tap (kh, kw) is the padded flat image shifted by kh*Wp + kw:
    # out_wide[co, y*Wp + x] = sum_taps w_tap[co, ci] * xpad[ci, y+kh, x+kw].
    acc = jnp.zeros((cout, span), jnp.float32)
    for kh in range(kh_size):
        for kw in range(kw_size):
            start = kh * wp + kw
            rhs = xpad_ref[:, start:start + span]        # contiguous lane slice
            acc = acc + jnp.dot(w_ref[kh * kw_size + kw], rhs,
                                preferred_element_type=jnp.float32)

    # ---- f32 epilogue: bias + PReLU (single shared alpha) ----
    z = acc + b_ref[...]                                  # (Cout,1) broadcast
    alpha = alpha_ref[0]
    res = jnp.where(z >= 0.0, z, alpha * z).astype(o_ref.dtype)

    # ---- compact wide rows (stride Wp) into the dense (Cout, Ho*Wo) output ----
    if wp == wo:
        o_ref[0] = res
    else:
        for y in range(ho):
            o_ref[0, :, y * wo:(y + 1) * wo] = res[:, y * wp:y * wp + wo]


@functools.partial(jax.jit, static_argnames=("stride", "padding"))
def conv_block(x_nchw, w_oihw, bias, alpha, *, stride=1, padding=1):
    """Forward of ConvBlock (bias=True, isuseBN=False, isusePL=True)."""
    if stride != 1:
        raise NotImplementedError("stride > 1 not implemented")  # TODO(synk)
    n, cin, h, w = x_nchw.shape
    cout, _, kh, kw = w_oihw.shape
    hp, wp = h + 2 * padding, w + 2 * padding
    ho, wo = hp - kh + 1, wp - kw + 1

    # Free reshapes only (no transposes, no cast passes over x).
    x_flat = x_nchw.reshape(n, cin, h * w)
    # Per-tap (Cout, Cin) weight matrices; tiny one-time prep.
    w_taps = jnp.transpose(w_oihw, (2, 3, 0, 1)).reshape(kh * kw, cout, cin)
    w_taps = w_taps.astype(jnp.bfloat16)
    b2 = bias.reshape(cout, 1).astype(jnp.float32)
    alpha_arr = jnp.asarray(alpha, jnp.float32).reshape(1)

    kernel = functools.partial(_convblock_kernel, h=h, w=w, pad=padding,
                               kh_size=kh, kw_size=kw)

    out_flat = pl.pallas_call(
        kernel,
        out_shape=jax.ShapeDtypeStruct((n, cout, ho * wo), jnp.float32),
        grid=(n,),
        in_specs=[
            # one image per grid step (pipelined over batch)
            pl.BlockSpec((1, cin, h * w), lambda i: (i, 0, 0)),
            # weights / bias: constant index_map -> fetched once, VMEM resident
            pl.BlockSpec((kh * kw, cout, cin), lambda i: (0, 0, 0)),
            pl.BlockSpec((cout, 1), lambda i: (0, 0)),
            # PReLU alpha scalar lives in SMEM
            pl.BlockSpec(memory_space=pltpu.MemorySpace.SMEM),
        ],
        out_specs=pl.BlockSpec((1, cout, ho * wo), lambda i: (i, 0, 0)),
        scratch_shapes=[pltpu.VMEM((cin, hp * wp), jnp.bfloat16)],
        compiler_params=pltpu.CompilerParams(
            dimension_semantics=("parallel",),      # megacore over batch
        ),
    )(x_flat, w_taps, b2, alpha_arr)

    # (N, Cout, Ho*Wo) -> NCHW is a free reshape (no transpose).
    return out_flat.reshape(n, cout, ho, wo).astype(x_nchw.dtype)


def _reference(x_nchw, w_oihw, bias, alpha, *, stride, padding):
    # Matches the kernel's compute precision: bf16 operands, f32 accumulate,
    # f32 bias + PReLU epilogue.
    out = jax.lax.conv_general_dilated(
        x_nchw.astype(jnp.bfloat16), w_oihw.astype(jnp.bfloat16),
        window_strides=(stride, stride),
        padding=((padding, padding), (padding, padding)),
        dimension_numbers=("NCHW", "OIHW", "NCHW"),
        preferred_element_type=jnp.float32)
    out = out + bias.reshape(1, -1, 1, 1).astype(jnp.float32)
    return jnp.where(out >= 0.0, out, alpha * out)


if __name__ == "__main__":
    # ConvBlock(input_size=4, output_size=8, kernel_size=3, stride=1, padding=1)
    N, Cin, H, W = 2, 4, 16, 16
    Cout, K, stride, padding = 8, 3, 1, 1

    key = jax.random.PRNGKey(0)
    k_x, k_w, k_b = jax.random.split(key, 3)
    x = jax.random.normal(k_x, (N, Cin, H, W), jnp.float32)
    weight = jax.random.normal(k_w, (Cout, Cin, K, K), jnp.float32) * 0.1
    bias = jax.random.normal(k_b, (Cout,), jnp.float32) * 0.1
    alpha = 0.25  # PyTorch PReLU default init (single shared parameter)

    out = conv_block(x, weight, bias, alpha, stride=stride, padding=padding)
    out = jax.block_until_ready(out)

    ref = _reference(x, weight, bias, alpha, stride=stride, padding=padding)
    assert out.shape == (N, Cout, H, W), out.shape
    assert jnp.allclose(out, ref, atol=2e-2, rtol=2e-2), \
        float(jnp.max(jnp.abs(out - ref)))

    print("KERNEL_OK")
</pallas_src>

<mosaic_0001>
module attributes {stable_mosaic.version = 11 : i64} {
  func.func @_convblock_kernel(%arg0: i32, %arg1: memref<1x4x256xf32, #tpu.memory_space<vmem>>, %arg2: memref<9x8x4xbf16, #tpu.memory_space<vmem>>, %arg3: memref<8x1xf32, #tpu.memory_space<vmem>>, %arg4: memref<1xf32, #tpu.memory_space<smem>>, %arg5: memref<1x8x256xf32, #tpu.memory_space<vmem>>, %arg6: memref<4x324xbf16, #tpu.memory_space<vmem>>) attributes {dimension_semantics = [#tpu.dimension_semantics<parallel>], iteration_bounds = array<i64: 2>, scalar_prefetch = 0 : i64, scratch_operands = 1 : i64, tpu.core_type = #tpu.core_type<tc>, window_params = [{transform_indices = @transform_0, window_bounds = array<i64: 1, 4, 256>}, {pipeline_mode = #tpu.pipeline_mode<synchronous>, transform_indices = @transform_1, window_bounds = array<i64: 9, 8, 4>}, {pipeline_mode = #tpu.pipeline_mode<synchronous>, transform_indices = @transform_2, window_bounds = array<i64: 8, 1>}, {transform_indices = @transform_3, window_bounds = array<i64: 1>}, {transform_indices = @transform_4, window_bounds = array<i64: 1, 8, 256>}]} {
    %cst = arith.constant 0.000000e+00 : bf16
    %0 = vector.broadcast %cst : bf16 to vector<4x19xbf16>
    %c0 = arith.constant 0 : index
    %c0_0 = arith.constant 0 : index
    %1 = vector.load %arg6[%c0, %c0_0] : memref<4x324xbf16, #tpu.memory_space<vmem>>, vector<4x19xbf16>
    tpu.vector_store %arg6[%c0, %c0_0], %0 {strides = array<i32>} : memref<4x324xbf16, #tpu.memory_space<vmem>>, vector<4x19xbf16>,
    %cst_1 = arith.constant 0.000000e+00 : bf16
    %2 = vector.broadcast %cst_1 : bf16 to vector<4x19xbf16>
    %c0_2 = arith.constant 0 : index
    %c305 = arith.constant 305 : index
    %3 = vector.load %arg6[%c0_2, %c305] : memref<4x324xbf16, #tpu.memory_space<vmem>>, vector<4x19xbf16>
    tpu.vector_store %arg6[%c0_2, %c305], %2 {strides = array<i32>} : memref<4x324xbf16, #tpu.memory_space<vmem>>, vector<4x19xbf16>,
    %c0_3 = arith.constant 0 : index
    %c0_4 = arith.constant 0 : index
    %c0_5 = arith.constant 0 : index
    %4 = vector.load %arg1[%c0_3, %c0_4, %c0_5] : memref<1x4x256xf32, #tpu.memory_space<vmem>>, vector<1x4x16xf32>
    %5 = vector.shape_cast %4 : vector<1x4x16xf32> to vector<4x16xf32>
    %6 = arith.truncf %5 : vector<4x16xf32> to vector<4x16xbf16>
    %c0_6 = arith.constant 0 : index
    %c19 = arith.constant 19 : index
    %7 = vector.load %arg6[%c0_6, %c19] : memref<4x324xbf16, #tpu.memory_space<vmem>>, vector<4x16xbf16>
    tpu.vector_store %arg6[%c0_6, %c19], %6 {strides = array<i32>} : memref<4x324xbf16, #tpu.memory_space<vmem>>, vector<4x16xbf16>,
    %cst_7 = arith.constant 0.000000e+00 : bf16
    %8 = vector.broadcast %cst_7 : bf16 to vector<4x2xbf16>
    %c0_8 = arith.constant 0 : index
    %c35 = arith.constant 35 : index
    %9 = vector.load %arg6[%c0_8, %c35] : memref<4x324xbf16, #tpu.memory_space<vmem>>, vector<4x2xbf16>
    tpu.vector_store %arg6[%c0_8, %c35], %8 {strides = array<i32>} : memref<4x324xbf16, #tpu.memory_space<vmem>>, vector<4x2xbf16>,
    %c0_9 = arith.constant 0 : index
    %c0_10 = arith.constant 0 : index
    %c16 = arith.constant 16 : index
    %10 = vector.load %arg1[%c0_9, %c0_10, %c16] : memref<1x4x256xf32, #tpu.memory_space<vmem>>, vector<1x4x16xf32>
    %11 = vector.shape_cast %10 : vector<1x4x16xf32> to vector<4x16xf32>
    %12 = arith.truncf %11 : vector<4x16xf32> to vector<4x16xbf16>
    %c0_11 = arith.constant 0 : index
    %c37 = arith.constant 37 : index
    %13 = vector.load %arg6[%c0_11, %c37] : memref<4x324xbf16, #tpu.memory_space<vmem>>, vector<4x16xbf16>
    tpu.vector_store %arg6[%c0_11, %c37], %12 {strides = array<i32>} : memref<4x324xbf16, #tpu.memory_space<vmem>>, vector<4x16xbf16>,
    %cst_12 = arith.constant 0.000000e+00 : bf16
    %14 = vector.broadcast %cst_12 : bf16 to vector<4x2xbf16>
    %c0_13 = arith.constant 0 : index
    %c53 = arith.constant 53 : index
    %15 = vector.load %arg6[%c0_13, %c53] : memref<4x324xbf16, #tpu.memory_space<vmem>>, vector<4x2xbf16>
    tpu.vector_store %arg6[%c0_13, %c53], %14 {strides = array<i32>} : memref<4x324xbf16, #tpu.memory_space<vmem>>, vector<4x2xbf16>,
    %c0_14 = arith.constant 0 : index
    %c0_15 = arith.constant 0 : index
    %c32 = arith.constant 32 : index
    %16 = vector.load %arg1[%c0_14, %c0_15, %c32] : memref<1x4x256xf32, #tpu.memory_space<vmem>>, vector<1x4x16xf32>
    %17 = vector.shape_cast %16 : vector<1x4x16xf32> to vector<4x16xf32>
    %18 = arith.truncf %17 : vector<4x16xf32> to vector<4x16xbf16>
    %c0_16 = arith.constant 0 : index
    %c55 = arith.constant 55 : index
    %19 = vector.load %arg6[%c0_16, %c55] : memref<4x324xbf16, #tpu.memory_space<vmem>>, vector<4x16xbf16>
    tpu.vector_store %arg6[%c0_16, %c55], %18 {strides = array<i32>} : memref<4x324xbf16, #tpu.memory_space<vmem>>, vector<4x16xbf16>,
    %cst_17 = arith.constant 0.000000e+00 : bf16
    %20 = vector.broadcast %cst_17 : bf16 to vector<4x2xbf16>
    %c0_18 = arith.constant 0 : index
    %c71 = arith.constant 71 : index
    %21 = vector.load %arg6[%c0_18, %c71] : memref<4x324xbf16, #tpu.memory_space<vmem>>, vector<4x2xbf16>
    tpu.vector_store %arg6[%c0_18, %c71], %20 {strides = array<i32>} : memref<4x324xbf16, #tpu.memory_space<vmem>>, vector<4x2xbf16>,
    %c0_19 = arith.constant 0 : index
    %c0_20 = arith.constant 0 : index
    %c48 = arith.constant 48 : index
    %22 = vector.load %arg1[%c0_19, %c0_20, %c48] : memref<1x4x256xf32, #tpu.memory_space<vmem>>, vector<1x4x16xf32>
    %23 = vector.shape_cast %22 : vector<1x4x16xf32> to vector<4x16xf32>
    %24 = arith.truncf %23 : vector<4x16xf32> to vector<4x16xbf16>
    %c0_21 = arith.constant 0 : index
    %c73 = arith.constant 73 : index
    %25 = vector.load %arg6[%c0_21, %c73] : memref<4x324xbf16, #tpu.memory_space<vmem>>, vector<4x16xbf16>
    tpu.vector_store %arg6[%c0_21, %c73], %24 {strides = array<i32>} : memref<4x324xbf16, #tpu.memory_space<vmem>>, vector<4x16xbf16>,
    %cst_22 = arith.constant 0.000000e+00 : bf16
    %26 = vector.broadcast %cst_22 : bf16 to vector<4x2xbf16>
    %c0_23 = arith.constant 0 : index
    %c89 = arith.constant 89 : index
    %27 = vector.load %arg6[%c0_23, %c89] : memref<4x324xbf16, #tpu.memory_space<vmem>>, vector<4x2xbf16>
    tpu.vector_store %arg6[%c0_23, %c89], %26 {strides = array<i32>} : memref<4x324xbf16, #tpu.memory_space<vmem>>, vector<4x2xbf16>,
    %c0_24 = arith.constant 0 : index
    %c0_25 = arith.constant 0 : index
    %c64 = arith.constant 64 : index
    %28 = vector.load %arg1[%c0_24, %c0_25, %c64] : memref<1x4x256xf32, #tpu.memory_space<vmem>>, vector<1x4x16xf32>
    %29 = vector.shape_cast %28 : vector<1x4x16xf32> to vector<4x16xf32>
    %30 = arith.truncf %29 : vector<4x16xf32> to vector<4x16xbf16>
    %c0_26 = arith.constant 0 : index
    %c91 = arith.constant 91 : index
    %31 = vector.load %arg6[%c0_26, %c91] : memref<4x324xbf16, #tpu.memory_space<vmem>>, vector<4x16xbf16>
    tpu.vector_store %arg6[%c0_26, %c91], %30 {strides = array<i32>} : memref<4x324xbf16, #tpu.memory_space<vmem>>, vector<4x16xbf16>,
    %cst_27 = arith.constant 0.000000e+00 : bf16
    %32 = vector.broadcast %cst_27 : bf16 to vector<4x2xbf16>
    %c0_28 = arith.constant 0 : index
    %c107 = arith.constant 107 : index
    %33 = vector.load %arg6[%c0_28, %c107] : memref<4x324xbf16, #tpu.memory_space<vmem>>, vector<4x2xbf16>
    tpu.vector_store %arg6[%c0_28, %c107], %32 {strides = array<i32>} : memref<4x324xbf16, #tpu.memory_space<vmem>>, vector<4x2xbf16>,
    %c0_29 = arith.constant 0 : index
    %c0_30 = arith.constant 0 : index
    %c80 = arith.constant 80 : index
    %34 = vector.load %arg1[%c0_29, %c0_30, %c80] : memref<1x4x256xf32, #tpu.memory_space<vmem>>, vector<1x4x16xf32>
    %35 = vector.shape_cast %34 : vector<1x4x16xf32> to vector<4x16xf32>
    %36 = arith.truncf %35 : vector<4x16xf32> to vector<4x16xbf16>
    %c0_31 = arith.constant 0 : index
    %c109 = arith.constant 109 : index
    %37 = vector.load %arg6[%c0_31, %c109] : memref<4x324xbf16, #tpu.memory_space<vmem>>, vector<4x16xbf16>
    tpu.vector_store %arg6[%c0_31, %c109], %36 {strides = array<i32>} : memref<4x324xbf16, #tpu.memory_space<vmem>>, vector<4x16xbf16>,
    %cst_32 = arith.constant 0.000000e+00 : bf16
    %38 = vector.broadcast %cst_32 : bf16 to vector<4x2xbf16>
    %c0_33 = arith.constant 0 : index
    %c125 = arith.constant 125 : index
    %39 = vector.load %arg6[%c0_33, %c125] : memref<4x324xbf16, #tpu.memory_space<vmem>>, vector<4x2xbf16>
    tpu.vector_store %arg6[%c0_33, %c125], %38 {strides = array<i32>} : memref<4x324xbf16, #tpu.memory_space<vmem>>, vector<4x2xbf16>,
    %c0_34 = arith.constant 0 : index
    %c0_35 = arith.constant 0 : index
    %c96 = arith.constant 96 : index
    %40 = vector.load %arg1[%c0_34, %c0_35, %c96] : memref<1x4x256xf32, #tpu.memory_space<vmem>>, vector<1x4x16xf32>
    %41 = vector.shape_cast %40 : vector<1x4x16xf32> to vector<4x16xf32>
    %42 = arith.truncf %41 : vector<4x16xf32> to vector<4x16xbf16>
    %c0_36 = arith.constant 0 : index
    %c127 = arith.constant 127 : index
    %43 = vector.load %arg6[%c0_36, %c127] : memref<4x324xbf16, #tpu.memory_space<vmem>>, vector<4x16xbf16>
    tpu.vector_store %arg6[%c0_36, %c127], %42 {strides = array<i32>} : memref<4x324xbf16, #tpu.memory_space<vmem>>, vector<4x16xbf16>,
    %cst_37 = arith.constant 0.000000e+00 : bf16
    %44 = vector.broadcast %cst_37 : bf16 to vector<4x2xbf16>
    %c0_38 = arith.constant 0 : index
    %c143 = arith.constant 143 : index
    %45 = vector.load %arg6[%c0_38, %c143] : memref<4x324xbf16, #tpu.memory_space<vmem>>, vector<4x2xbf16>
    tpu.vector_store %arg6[%c0_38, %c143], %44 {strides = array<i32>} : memref<4x324xbf16, #tpu.memory_space<vmem>>, vector<4x2xbf16>,
    %c0_39 = arith.constant 0 : index
    %c0_40 = arith.constant 0 : index
    %c112 = arith.constant 112 : index
    %46 = vector.load %arg1[%c0_39, %c0_40, %c112] : memref<1x4x256xf32, #tpu.memory_space<vmem>>, vector<1x4x16xf32>
    %47 = vector.shape_cast %46 : vector<1x4x16xf32> to vector<4x16xf32>
    %48 = arith.truncf %47 : vector<4x16xf32> to vector<4x16xbf16>
    %c0_41 = arith.constant 0 : index
    %c145 = arith.constant 145 : index
    %49 = vector.load %arg6[%c0_41, %c145] : memref<4x324xbf16, #tpu.memory_space<vmem>>, vector<4x16xbf16>
    tpu.vector_store %arg6[%c0_41, %c145], %48 {strides = array<i32>} : memref<4x324xbf16, #tpu.memory_space<vmem>>, vector<4x16xbf16>,
    %cst_42 = arith.constant 0.000000e+00 : bf16
    %50 = vector.broadcast %cst_42 : bf16 to vector<4x2xbf16>
    %c0_43 = arith.constant 0 : index
    %c161 = arith.constant 161 : index
    %51 = vector.load %arg6[%c0_43, %c161] : memref<4x324xbf16, #tpu.memory_space<vmem>>, vector<4x2xbf16>
    tpu.vector_store %arg6[%c0_43, %c161], %50 {strides = array<i32>} : memref<4x324xbf16, #tpu.memory_space<vmem>>, vector<4x2xbf16>,
    %c0_44 = arith.constant 0 : index
    %c0_45 = arith.constant 0 : index
    %c128 = arith.constant 128 : index
    %52 = vector.load %arg1[%c0_44, %c0_45, %c128] : memref<1x4x256xf32, #tpu.memory_space<vmem>>, vector<1x4x16xf32>
    %53 = vector.shape_cast %52 : vector<1x4x16xf32> to vector<4x16xf32>
    %54 = arith.truncf %53 : vector<4x16xf32> to vector<4x16xbf16>
    %c0_46 = arith.constant 0 : index
    %c163 = arith.constant 163 : index
    %55 = vector.load %arg6[%c0_46, %c163] : memref<4x324xbf16, #tpu.memory_space<vmem>>, vector<4x16xbf16>
    tpu.vector_store %arg6[%c0_46, %c163], %54 {strides = array<i32>} : memref<4x324xbf16, #tpu.memory_space<vmem>>, vector<4x16xbf16>,
    %cst_47 = arith.constant 0.000000e+00 : bf16
    %56 = vector.broadcast %cst_47 : bf16 to vector<4x2xbf16>
    %c0_48 = arith.constant 0 : index
    %c179 = arith.constant 179 : index
    %57 = vector.load %arg6[%c0_48, %c179] : memref<4x324xbf16, #tpu.memory_space<vmem>>, vector<4x2xbf16>
    tpu.vector_store %arg6[%c0_48, %c179], %56 {strides = array<i32>} : memref<4x324xbf16, #tpu.memory_space<vmem>>, vector<4x2xbf16>,
    %c0_49 = arith.constant 0 : index
    %c0_50 = arith.constant 0 : index
    %c144 = arith.constant 144 : index
    %58 = vector.load %arg1[%c0_49, %c0_50, %c144] : memref<1x4x256xf32, #tpu.memory_space<vmem>>, vector<1x4x16xf32>
    %59 = vector.shape_cast %58 : vector<1x4x16xf32> to vector<4x16xf32>
    %60 = arith.truncf %59 : vector<4x16xf32> to vector<4x16xbf16>
    %c0_51 = arith.constant 0 : index
    %c181 = arith.constant 181 : index
    %61 = vector.load %arg6[%c0_51, %c181] : memref<4x324xbf16, #tpu.memory_space<vmem>>, vector<4x16xbf16>
    tpu.vector_store %arg6[%c0_51, %c181], %60 {strides = array<i32>} : memref<4x324xbf16, #tpu.memory_space<vmem>>, vector<4x16xbf16>,
    %cst_52 = arith.constant 0.000000e+00 : bf16
    %62 = vector.broadcast %cst_52 : bf16 to vector<4x2xbf16>
    %c0_53 = arith.constant 0 : index
    %c197 = arith.constant 197 : index
    %63 = vector.load %arg6[%c0_53, %c197] : memref<4x324xbf16, #tpu.memory_space<vmem>>, vector<4x2xbf16>
    tpu.vector_store %arg6[%c0_53, %c197], %62 {strides = array<i32>} : memref<4x324xbf16, #tpu.memory_space<vmem>>, vector<4x2xbf16>,
    %c0_54 = arith.constant 0 : index
    %c0_55 = arith.constant 0 : index
    %c160 = arith.constant 160 : index
    %64 = vector.load %arg1[%c0_54, %c0_55, %c160] : memref<1x4x256xf32, #tpu.memory_space<vmem>>, vector<1x4x16xf32>
    %65 = vector.shape_cast %64 : vector<1x4x16xf32> to vector<4x16xf32>
    %66 = arith.truncf %65 : vector<4x16xf32> to vector<4x16xbf16>
    %c0_56 = arith.constant 0 : index
    %c199 = arith.constant 199 : index
    %67 = vector.load %arg6[%c0_56, %c199] : memref<4x324xbf16, #tpu.memory_space<vmem>>, vector<4x16xbf16>
    tpu.vector_store %arg6[%c0_56, %c199], %66 {strides = array<i32>} : memref<4x324xbf16, #tpu.memory_space<vmem>>, vector<4x16xbf16>,
    %cst_57 = arith.constant 0.000000e+00 : bf16
    %68 = vector.broadcast %cst_57 : bf16 to vector<4x2xbf16>
    %c0_58 = arith.constant 0 : index
    %c215 = arith.constant 215 : index
    %69 = vector.load %arg6[%c0_58, %c215] : memref<4x324xbf16, #tpu.memory_space<vmem>>, vector<4x2xbf16>
    tpu.vector_store %arg6[%c0_58, %c215], %68 {strides = array<i32>} : memref<4x324xbf16, #tpu.memory_space<vmem>>, vector<4x2xbf16>,
    %c0_59 = arith.constant 0 : index
    %c0_60 = arith.constant 0 : index
    %c176 = arith.constant 176 : index
    %70 = vector.load %arg1[%c0_59, %c0_60, %c176] : memref<1x4x256xf32, #tpu.memory_space<vmem>>, vector<1x4x16xf32>
    %71 = vector.shape_cast %70 : vector<1x4x16xf32> to vector<4x16xf32>
    %72 = arith.truncf %71 : vector<4x16xf32> to vector<4x16xbf16>
    %c0_61 = arith.constant 0 : index
    %c217 = arith.constant 217 : index
    %73 = vector.load %arg6[%c0_61, %c217] : memref<4x324xbf16, #tpu.memory_space<vmem>>, vector<4x16xbf16>
    tpu.vector_store %arg6[%c0_61, %c217], %72 {strides = array<i32>} : memref<4x324xbf16, #tpu.memory_space<vmem>>, vector<4x16xbf16>,
    %cst_62 = arith.constant 0.000000e+00 : bf16
    %74 = vector.broadcast %cst_62 : bf16 to vector<4x2xbf16>
    %c0_63 = arith.constant 0 : index
    %c233 = arith.constant 233 : index
    %75 = vector.load %arg6[%c0_63, %c233] : memref<4x324xbf16, #tpu.memory_space<vmem>>, vector<4x2xbf16>
    tpu.vector_store %arg6[%c0_63, %c233], %74 {strides = array<i32>} : memref<4x324xbf16, #tpu.memory_space<vmem>>, vector<4x2xbf16>,
    %c0_64 = arith.constant 0 : index
    %c0_65 = arith.constant 0 : index
    %c192 = arith.constant 192 : index
    %76 = vector.load %arg1[%c0_64, %c0_65, %c192] : memref<1x4x256xf32, #tpu.memory_space<vmem>>, vector<1x4x16xf32>
    %77 = vector.shape_cast %76 : vector<1x4x16xf32> to vector<4x16xf32>
    %78 = arith.truncf %77 : vector<4x16xf32> to vector<4x16xbf16>
    %c0_66 = arith.constant 0 : index
    %c235 = arith.constant 235 : index
    %79 = vector.load %arg6[%c0_66, %c235] : memref<4x324xbf16, #tpu.memory_space<vmem>>, vector<4x16xbf16>
    tpu.vector_store %arg6[%c0_66, %c235], %78 {strides = array<i32>} : memref<4x324xbf16, #tpu.memory_space<vmem>>, vector<4x16xbf16>,
    %cst_67 = arith.constant 0.000000e+00 : bf16
    %80 = vector.broadcast %cst_67 : bf16 to vector<4x2xbf16>
    %c0_68 = arith.constant 0 : index
    %c251 = arith.constant 251 : index
    %81 = vector.load %arg6[%c0_68, %c251] : memref<4x324xbf16, #tpu.memory_space<vmem>>, vector<4x2xbf16>
    tpu.vector_store %arg6[%c0_68, %c251], %80 {strides = array<i32>} : memref<4x324xbf16, #tpu.memory_space<vmem>>, vector<4x2xbf16>,
    %c0_69 = arith.constant 0 : index
    %c0_70 = arith.constant 0 : index
    %c208 = arith.constant 208 : index
    %82 = vector.load %arg1[%c0_69, %c0_70, %c208] : memref<1x4x256xf32, #tpu.memory_space<vmem>>, vector<1x4x16xf32>
    %83 = vector.shape_cast %82 : vector<1x4x16xf32> to vector<4x16xf32>
    %84 = arith.truncf %83 : vector<4x16xf32> to vector<4x16xbf16>
    %c0_71 = arith.constant 0 : index
    %c253 = arith.constant 253 : index
    %85 = vector.load %arg6[%c0_71, %c253] : memref<4x324xbf16, #tpu.memory_space<vmem>>, vector<4x16xbf16>
    tpu.vector_store %arg6[%c0_71, %c253], %84 {strides = array<i32>} : memref<4x324xbf16, #tpu.memory_space<vmem>>, vector<4x16xbf16>,
    %cst_72 = arith.constant 0.000000e+00 : bf16
    %86 = vector.broadcast %cst_72 : bf16 to vector<4x2xbf16>
    %c0_73 = arith.constant 0 : index
    %c269 = arith.constant 269 : index
    %87 = vector.load %arg6[%c0_73, %c269] : memref<4x324xbf16, #tpu.memory_space<vmem>>, vector<4x2xbf16>
    tpu.vector_store %arg6[%c0_73, %c269], %86 {strides = array<i32>} : memref<4x324xbf16, #tpu.memory_space<vmem>>, vector<4x2xbf16>,
    %c0_74 = arith.constant 0 : index
    %c0_75 = arith.constant 0 : index
    %c224 = arith.constant 224 : index
    %88 = vector.load %arg1[%c0_74, %c0_75, %c224] : memref<1x4x256xf32, #tpu.memory_space<vmem>>, vector<1x4x16xf32>
    %89 = vector.shape_cast %88 : vector<1x4x16xf32> to vector<4x16xf32>
    %90 = arith.truncf %89 : vector<4x16xf32> to vector<4x16xbf16>
    %c0_76 = arith.constant 0 : index
    %c271 = arith.constant 271 : index
    %91 = vector.load %arg6[%c0_76, %c271] : memref<4x324xbf16, #tpu.memory_space<vmem>>, vector<4x16xbf16>
    tpu.vector_store %arg6[%c0_76, %c271], %90 {strides = array<i32>} : memref<4x324xbf16, #tpu.memory_space<vmem>>, vector<4x16xbf16>,
    %cst_77 = arith.constant 0.000000e+00 : bf16
    %92 = vector.broadcast %cst_77 : bf16 to vector<4x2xbf16>
    %c0_78 = arith.constant 0 : index
    %c287 = arith.constant 287 : index
    %93 = vector.load %arg6[%c0_78, %c287] : memref<4x324xbf16, #tpu.memory_space<vmem>>, vector<4x2xbf16>
    tpu.vector_store %arg6[%c0_78, %c287], %92 {strides = array<i32>} : memref<4x324xbf16, #tpu.memory_space<vmem>>, vector<4x2xbf16>,
    %c0_79 = arith.constant 0 : index
    %c0_80 = arith.constant 0 : index
    %c240 = arith.constant 240 : index
    %94 = vector.load %arg1[%c0_79, %c0_80, %c240] : memref<1x4x256xf32, #tpu.memory_space<vmem>>, vector<1x4x16xf32>
    %95 = vector.shape_cast %94 : vector<1x4x16xf32> to vector<4x16xf32>
    %96 = arith.truncf %95 : vector<4x16xf32> to vector<4x16xbf16>
    %c0_81 = arith.constant 0 : index
    %c289 = arith.constant 289 : index
    %97 = vector.load %arg6[%c0_81, %c289] : memref<4x324xbf16, #tpu.memory_space<vmem>>, vector<4x16xbf16>
    tpu.vector_store %arg6[%c0_81, %c289], %96 {strides = array<i32>} : memref<4x324xbf16, #tpu.memory_space<vmem>>, vector<4x16xbf16>,
    %cst_82 = arith.constant 0.000000e+00 : f32
    %98 = vector.broadcast %cst_82 : f32 to vector<8x286xf32>
    %c0_83 = arith.constant 0 : index
    %c0_84 = arith.constant 0 : index
    %99 = vector.load %arg6[%c0_83, %c0_84] : memref<4x324xbf16, #tpu.memory_space<vmem>>, vector<4x286xbf16>
    %c0_85 = arith.constant 0 : index
    %c0_86 = arith.constant 0 : index
    %c0_87 = arith.constant 0 : index
    %100 = vector.load %arg2[%c0_85, %c0_86, %c0_87] : memref<9x8x4xbf16, #tpu.memory_space<vmem>>, vector<1x8x4xbf16>
    %101 = vector.shape_cast %100 : vector<1x8x4xbf16> to vector<8x4xbf16>
    %cst_88 = arith.constant dense<0.000000e+00> : vector<8x286xf32>
    %102 = tpu.matmul %101, %99, %cst_88 {dimension_numbers = #tpu.dot_dimension_numbers<[1], [0], [0], [1], [0, 0, 1, 1], [], []>} : vector<8x4xbf16>, vector<4x286xbf16>, vector<8x286xf32> -> vector<8x286xf32>
    %103 = arith.addf %98, %102 : vector<8x286xf32>
    %c0_89 = arith.constant 0 : index
    %c1 = arith.constant 1 : index
    %104 = vector.load %arg6[%c0_89, %c1] : memref<4x324xbf16, #tpu.memory_space<vmem>>, vector<4x286xbf16>
    %c1_90 = arith.constant 1 : index
    %c0_91 = arith.constant 0 : index
    %c0_92 = arith.constant 0 : index
    %105 = vector.load %arg2[%c1_90, %c0_91, %c0_92] : memref<9x8x4xbf16, #tpu.memory_space<vmem>>, vector<1x8x4xbf16>
    %106 = vector.shape_cast %105 : vector<1x8x4xbf16> to vector<8x4xbf16>
    %cst_93 = arith.constant dense<0.000000e+00> : vector<8x286xf32>
    %107 = tpu.matmul %106, %104, %cst_93 {dimension_numbers = #tpu.dot_dimension_numbers<[1], [0], [0], [1], [0, 0, 1, 1], [], []>} : vector<8x4xbf16>, vector<4x286xbf16>, vector<8x286xf32> -> vector<8x286xf32>
    %108 = arith.addf %103, %107 : vector<8x286xf32>
    %c0_94 = arith.constant 0 : index
    %c2 = arith.constant 2 : index
    %109 = vector.load %arg6[%c0_94, %c2] : memref<4x324xbf16, #tpu.memory_space<vmem>>, vector<4x286xbf16>
    %c2_95 = arith.constant 2 : index
    %c0_96 = arith.constant 0 : index
    %c0_97 = arith.constant 0 : index
    %110 = vector.load %arg2[%c2_95, %c0_96, %c0_97] : memref<9x8x4xbf16, #tpu.memory_space<vmem>>, vector<1x8x4xbf16>
    %111 = vector.shape_cast %110 : vector<1x8x4xbf16> to vector<8x4xbf16>
    %cst_98 = arith.constant dense<0.000000e+00> : vector<8x286xf32>
    %112 = tpu.matmul %111, %109, %cst_98 {dimension_numbers = #tpu.dot_dimension_numbers<[1], [0], [0], [1], [0, 0, 1, 1], [], []>} : vector<8x4xbf16>, vector<4x286xbf16>, vector<8x286xf32> -> vector<8x286xf32>
    %113 = arith.addf %108, %112 : vector<8x286xf32>
    %c0_99 = arith.constant 0 : index
    %c18 = arith.constant 18 : index
    %114 = vector.load %arg6[%c0_99, %c18] : memref<4x324xbf16, #tpu.memory_space<vmem>>, vector<4x286xbf16>
    %c3 = arith.constant 3 : index
    %c0_100 = arith.constant 0 : index
    %c0_101 = arith.constant 0 : index
    %115 = vector.load %arg2[%c3, %c0_100, %c0_101] : memref<9x8x4xbf16, #tpu.memory_space<vmem>>, vector<1x8x4xbf16>
    %116 = vector.shape_cast %115 : vector<1x8x4xbf16> to vector<8x4xbf16>
    %cst_102 = arith.constant dense<0.000000e+00> : vector<8x286xf32>
    %117 = tpu.matmul %116, %114, %cst_102 {dimension_numbers = #tpu.dot_dimension_numbers<[1], [0], [0], [1], [0, 0, 1, 1], [], []>} : vector<8x4xbf16>, vector<4x286xbf16>, vector<8x286xf32> -> vector<8x286xf32>
    %118 = arith.addf %113, %117 : vector<8x286xf32>
    %c0_103 = arith.constant 0 : index
    %c19_104 = arith.constant 19 : index
    %119 = vector.load %arg6[%c0_103, %c19_104] : memref<4x324xbf16, #tpu.memory_space<vmem>>, vector<4x286xbf16>
    %c4 = arith.constant 4 : index
    %c0_105 = arith.constant 0 : index
    %c0_106 = arith.constant 0 : index
    %120 = vector.load %arg2[%c4, %c0_105, %c0_106] : memref<9x8x4xbf16, #tpu.memory_space<vmem>>, vector<1x8x4xbf16>
    %121 = vector.shape_cast %120 : vector<1x8x4xbf16> to vector<8x4xbf16>
    %cst_107 = arith.constant dense<0.000000e+00> : vector<8x286xf32>
    %122 = tpu.matmul %121, %119, %cst_107 {dimension_numbers = #tpu.dot_dimension_numbers<[1], [0], [0], [1], [0, 0, 1, 1], [], []>} : vector<8x4xbf16>, vector<4x286xbf16>, vector<8x286xf32> -> vector<8x286xf32>
    %123 = arith.addf %118, %122 : vector<8x286xf32>
    %c0_108 = arith.constant 0 : index
    %c20 = arith.constant 20 : index
    %124 = vector.load %arg6[%c0_108, %c20] : memref<4x324xbf16, #tpu.memory_space<vmem>>, vector<4x286xbf16>
    %c5 = arith.constant 5 : index
    %c0_109 = arith.constant 0 : index
    %c0_110 = arith.constant 0 : index
    %125 = vector.load %arg2[%c5, %c0_109, %c0_110] : memref<9x8x4xbf16, #tpu.memory_space<vmem>>, vector<1x8x4xbf16>
    %126 = vector.shape_cast %125 : vector<1x8x4xbf16> to vector<8x4xbf16>
    %cst_111 = arith.constant dense<0.000000e+00> : vector<8x286xf32>
    %127 = tpu.matmul %126, %124, %cst_111 {dimension_numbers = #tpu.dot_dimension_numbers<[1], [0], [0], [1], [0, 0, 1, 1], [], []>} : vector<8x4xbf16>, vector<4x286xbf16>, vector<8x286xf32> -> vector<8x286xf32>
    %128 = arith.addf %123, %127 : vector<8x286xf32>
    %c0_112 = arith.constant 0 : index
    %c36 = arith.constant 36 : index
    %129 = vector.load %arg6[%c0_112, %c36] : memref<4x324xbf16, #tpu.memory_space<vmem>>, vector<4x286xbf16>
    %c6 = arith.constant 6 : index
    %c0_113 = arith.constant 0 : index
    %c0_114 = arith.constant 0 : index
    %130 = vector.load %arg2[%c6, %c0_113, %c0_114] : memref<9x8x4xbf16, #tpu.memory_space<vmem>>, vector<1x8x4xbf16>
    %131 = vector.shape_cast %130 : vector<1x8x4xbf16> to vector<8x4xbf16>
    %cst_115 = arith.constant dense<0.000000e+00> : vector<8x286xf32>
    %132 = tpu.matmul %131, %129, %cst_115 {dimension_numbers = #tpu.dot_dimension_numbers<[1], [0], [0], [1], [0, 0, 1, 1], [], []>} : vector<8x4xbf16>, vector<4x286xbf16>, vector<8x286xf32> -> vector<8x286xf32>
    %133 = arith.addf %128, %132 : vector<8x286xf32>
    %c0_116 = arith.constant 0 : index
    %c37_117 = arith.constant 37 : index
    %134 = vector.load %arg6[%c0_116, %c37_117] : memref<4x324xbf16, #tpu.memory_space<vmem>>, vector<4x286xbf16>
    %c7 = arith.constant 7 : index
    %c0_118 = arith.constant 0 : index
    %c0_119 = arith.constant 0 : index
    %135 = vector.load %arg2[%c7, %c0_118, %c0_119] : memref<9x8x4xbf16, #tpu.memory_space<vmem>>, vector<1x8x4xbf16>
    %136 = vector.shape_cast %135 : vector<1x8x4xbf16> to vector<8x4xbf16>
    %cst_120 = arith.constant dense<0.000000e+00> : vector<8x286xf32>
    %137 = tpu.matmul %136, %134, %cst_120 {dimension_numbers = #tpu.dot_dimension_numbers<[1], [0], [0], [1], [0, 0, 1, 1], [], []>} : vector<8x4xbf16>, vector<4x286xbf16>, vector<8x286xf32> -> vector<8x286xf32>
    %138 = arith.addf %133, %137 : vector<8x286xf32>
    %c0_121 = arith.constant 0 : index
    %c38 = arith.constant 38 : index
    %139 = vector.load %arg6[%c0_121, %c38] : memref<4x324xbf16, #tpu.memory_space<vmem>>, vector<4x286xbf16>
    %c8 = arith.constant 8 : index
    %c0_122 = arith.constant 0 : index
    %c0_123 = arith.constant 0 : index
    %140 = vector.load %arg2[%c8, %c0_122, %c0_123] : memref<9x8x4xbf16, #tpu.memory_space<vmem>>, vector<1x8x4xbf16>
    %141 = vector.shape_cast %140 : vector<1x8x4xbf16> to vector<8x4xbf16>
    %cst_124 = arith.constant dense<0.000000e+00> : vector<8x286xf32>
    %142 = tpu.matmul %141, %139, %cst_124 {dimension_numbers = #tpu.dot_dimension_numbers<[1], [0], [0], [1], [0, 0, 1, 1], [], []>} : vector<8x4xbf16>, vector<4x286xbf16>, vector<8x286xf32> -> vector<8x286xf32>
    %143 = arith.addf %138, %142 : vector<8x286xf32>
    %c0_125 = arith.constant 0 : index
    %c0_126 = arith.constant 0 : index
    %144 = vector.load %arg3[%c0_125, %c0_126] : memref<8x1xf32, #tpu.memory_space<vmem>>, vector<8x1xf32>
    %145 = vector.broadcast %144 : vector<8x1xf32> to vector<8x286xf32>
    %146 = arith.addf %143, %145 : vector<8x286xf32>
    %c0_127 = arith.constant 0 : index
    %147 = memref.load %arg4[%c0_127] : memref<1xf32, #tpu.memory_space<smem>>
    %cst_128 = arith.constant 0.000000e+00 : f32
    %148 = vector.broadcast %cst_128 : f32 to vector<8x286xf32>
    %149 = arith.cmpf oge, %146, %148 : vector<8x286xf32>
    %150 = vector.broadcast %147 : f32 to vector<8x286xf32>
    %151 = arith.mulf %150, %146 : vector<8x286xf32>
    %152 = arith.select %149, %146, %151 : vector<8x286xi1>, vector<8x286xf32>
    %153 = vector.extract_strided_slice %152 {offsets = [0, 0], sizes = [8, 16], strides = [1, 1]} : vector<8x286xf32> to vector<8x16xf32>
    %c0_129 = arith.constant 0 : index
    %c0_130 = arith.constant 0 : index
    %c0_131 = arith.constant 0 : index
    %154 = vector.load %arg5[%c0_129, %c0_130, %c0_131] : memref<1x8x256xf32, #tpu.memory_space<vmem>>, vector<1x8x16xf32>
    %155 = vector.shape_cast %154 : vector<1x8x16xf32> to vector<8x16xf32>
    %156 = vector.shape_cast %153 : vector<8x16xf32> to vector<1x8x16xf32>
    tpu.vector_store %arg5[%c0_129, %c0_130, %c0_131], %156 {strides = array<i32>} : memref<1x8x256xf32, #tpu.memory_space<vmem>>, vector<1x8x16xf32>,
    %157 = vector.extract_strided_slice %152 {offsets = [0, 18], sizes = [8, 16], strides = [1, 1]} : vector<8x286xf32> to vector<8x16xf32>
    %c0_132 = arith.constant 0 : index
    %c0_133 = arith.constant 0 : index
    %c16_134 = arith.constant 16 : index
    %158 = vector.load %arg5[%c0_132, %c0_133, %c16_134] : memref<1x8x256xf32, #tpu.memory_space<vmem>>, vector<1x8x16xf32>
    %159 = vector.shape_cast %158 : vector<1x8x16xf32> to vector<8x16xf32>
    %160 = vector.shape_cast %157 : vector<8x16xf32> to vector<1x8x16xf32>
    tpu.vector_store %arg5[%c0_132, %c0_133, %c16_134], %160 {strides = array<i32>} : memref<1x8x256xf32, #tpu.memory_space<vmem>>, vector<1x8x16xf32>,
    %161 = vector.extract_strided_slice %152 {offsets = [0, 36], sizes = [8, 16], strides = [1, 1]} : vector<8x286xf32> to vector<8x16xf32>
    %c0_135 = arith.constant 0 : index
    %c0_136 = arith.constant 0 : index
    %c32_137 = arith.constant 32 : index
    %162 = vector.load %arg5[%c0_135, %c0_136, %c32_137] : memref<1x8x256xf32, #tpu.memory_space<vmem>>, vector<1x8x16xf32>
    %163 = vector.shape_cast %162 : vector<1x8x16xf32> to vector<8x16xf32>
    %164 = vector.shape_cast %161 : vector<8x16xf32> to vector<1x8x16xf32>
    tpu.vector_store %arg5[%c0_135, %c0_136, %c32_137], %164 {strides = array<i32>} : memref<1x8x256xf32, #tpu.memory_space<vmem>>, vector<1x8x16xf32>,
    %165 = vector.extract_strided_slice %152 {offsets = [0, 54], sizes = [8, 16], strides = [1, 1]} : vector<8x286xf32> to vector<8x16xf32>
    %c0_138 = arith.constant 0 : index
    %c0_139 = arith.constant 0 : index
    %c48_140 = arith.constant 48 : index
    %166 = vector.load %arg5[%c0_138, %c0_139, %c48_140] : memref<1x8x256xf32, #tpu.memory_space<vmem>>, vector<1x8x16xf32>
    %167 = vector.shape_cast %166 : vector<1x8x16xf32> to vector<8x16xf32>
    %168 = vector.shape_cast %165 : vector<8x16xf32> to vector<1x8x16xf32>
    tpu.vector_store %arg5[%c0_138, %c0_139, %c48_140], %168 {strides = array<i32>} : memref<1x8x256xf32, #tpu.memory_space<vmem>>, vector<1x8x16xf32>,
    %169 = vector.extract_strided_slice %152 {offsets = [0, 72], sizes = [8, 16], strides = [1, 1]} : vector<8x286xf32> to vector<8x16xf32>
    %c0_141 = arith.constant 0 : index
    %c0_142 = arith.constant 0 : index
    %c64_143 = arith.constant 64 : index
    %170 = vector.load %arg5[%c0_141, %c0_142, %c64_143] : memref<1x8x256xf32, #tpu.memory_space<vmem>>, vector<1x8x16xf32>
    %171 = vector.shape_cast %170 : vector<1x8x16xf32> to vector<8x16xf32>
    %172 = vector.shape_cast %169 : vector<8x16xf32> to vector<1x8x16xf32>
    tpu.vector_store %arg5[%c0_141, %c0_142, %c64_143], %172 {strides = array<i32>} : memref<1x8x256xf32, #tpu.memory_space<vmem>>, vector<1x8x16xf32>,
    %173 = vector.extract_strided_slice %152 {offsets = [0, 90], sizes = [8, 16], strides = [1, 1]} : vector<8x286xf32> to vector<8x16xf32>
    %c0_144 = arith.constant 0 : index
    %c0_145 = arith.constant 0 : index
    %c80_146 = arith.constant 80 : index
    %174 = vector.load %arg5[%c0_144, %c0_145, %c80_146] : memref<1x8x256xf32, #tpu.memory_space<vmem>>, vector<1x8x16xf32>
    %175 = vector.shape_cast %174 : vector<1x8x16xf32> to vector<8x16xf32>
    %176 = vector.shape_cast %173 : vector<8x16xf32> to vector<1x8x16xf32>
    tpu.vector_store %arg5[%c0_144, %c0_145, %c80_146], %176 {strides = array<i32>} : memref<1x8x256xf32, #tpu.memory_space<vmem>>, vector<1x8x16xf32>,
    %177 = vector.extract_strided_slice %152 {offsets = [0, 108], sizes = [8, 16], strides = [1, 1]} : vector<8x286xf32> to vector<8x16xf32>
    %c0_147 = arith.constant 0 : index
    %c0_148 = arith.constant 0 : index
    %c96_149 = arith.constant 96 : index
    %178 = vector.load %arg5[%c0_147, %c0_148, %c96_149] : memref<1x8x256xf32, #tpu.memory_space<vmem>>, vector<1x8x16xf32>
    %179 = vector.shape_cast %178 : vector<1x8x16xf32> to vector<8x16xf32>
    %180 = vector.shape_cast %177 : vector<8x16xf32> to vector<1x8x16xf32>
    tpu.vector_store %arg5[%c0_147, %c0_148, %c96_149], %180 {strides = array<i32>} : memref<1x8x256xf32, #tpu.memory_space<vmem>>, vector<1x8x16xf32>,
    %181 = vector.extract_strided_slice %152 {offsets = [0, 126], sizes = [8, 16], strides = [1, 1]} : vector<8x286xf32> to vector<8x16xf32>
    %c0_150 = arith.constant 0 : index
    %c0_151 = arith.constant 0 : index
    %c112_152 = arith.constant 112 : index
    %182 = vector.load %arg5[%c0_150, %c0_151, %c112_152] : memref<1x8x256xf32, #tpu.memory_space<vmem>>, vector<1x8x16xf32>
    %183 = vector.shape_cast %182 : vector<1x8x16xf32> to vector<8x16xf32>
    %184 = vector.shape_cast %181 : vector<8x16xf32> to vector<1x8x16xf32>
    tpu.vector_store %arg5[%c0_150, %c0_151, %c112_152], %184 {strides = array<i32>} : memref<1x8x256xf32, #tpu.memory_space<vmem>>, vector<1x8x16xf32>,
    %185 = vector.extract_strided_slice %152 {offsets = [0, 144], sizes = [8, 16], strides = [1, 1]} : vector<8x286xf32> to vector<8x16xf32>
    %c0_153 = arith.constant 0 : index
    %c0_154 = arith.constant 0 : index
    %c128_155 = arith.constant 128 : index
    %186 = vector.load %arg5[%c0_153, %c0_154, %c128_155] : memref<1x8x256xf32, #tpu.memory_space<vmem>>, vector<1x8x16xf32>
    %187 = vector.shape_cast %186 : vector<1x8x16xf32> to vector<8x16xf32>
    %188 = vector.shape_cast %185 : vector<8x16xf32> to vector<1x8x16xf32>
    tpu.vector_store %arg5[%c0_153, %c0_154, %c128_155], %188 {strides = array<i32>} : memref<1x8x256xf32, #tpu.memory_space<vmem>>, vector<1x8x16xf32>,
    %189 = vector.extract_strided_slice %152 {offsets = [0, 162], sizes = [8, 16], strides = [1, 1]} : vector<8x286xf32> to vector<8x16xf32>
    %c0_156 = arith.constant 0 : index
    %c0_157 = arith.constant 0 : index
    %c144_158 = arith.constant 144 : index
    %190 = vector.load %arg5[%c0_156, %c0_157, %c144_158] : memref<1x8x256xf32, #tpu.memory_space<vmem>>, vector<1x8x16xf32>
    %191 = vector.shape_cast %190 : vector<1x8x16xf32> to vector<8x16xf32>
    %192 = vector.shape_cast %189 : vector<8x16xf32> to vector<1x8x16xf32>
    tpu.vector_store %arg5[%c0_156, %c0_157, %c144_158], %192 {strides = array<i32>} : memref<1x8x256xf32, #tpu.memory_space<vmem>>, vector<1x8x16xf32>,
    %193 = vector.extract_strided_slice %152 {offsets = [0, 180], sizes = [8, 16], strides = [1, 1]} : vector<8x286xf32> to vector<8x16xf32>
    %c0_159 = arith.constant 0 : index
    %c0_160 = arith.constant 0 : index
    %c160_161 = arith.constant 160 : index
    %194 = vector.load %arg5[%c0_159, %c0_160, %c160_161] : memref<1x8x256xf32, #tpu.memory_space<vmem>>, vector<1x8x16xf32>
    %195 = vector.shape_cast %194 : vector<1x8x16xf32> to vector<8x16xf32>
    %196 = vector.shape_cast %193 : vector<8x16xf32> to vector<1x8x16xf32>
    tpu.vector_store %arg5[%c0_159, %c0_160, %c160_161], %196 {strides = array<i32>} : memref<1x8x256xf32, #tpu.memory_space<vmem>>, vector<1x8x16xf32>,
    %197 = vector.extract_strided_slice %152 {offsets = [0, 198], sizes = [8, 16], strides = [1, 1]} : vector<8x286xf32> to vector<8x16xf32>
    %c0_162 = arith.constant 0 : index
    %c0_163 = arith.constant 0 : index
    %c176_164 = arith.constant 176 : index
    %198 = vector.load %arg5[%c0_162, %c0_163, %c176_164] : memref<1x8x256xf32, #tpu.memory_space<vmem>>, vector<1x8x16xf32>
    %199 = vector.shape_cast %198 : vector<1x8x16xf32> to vector<8x16xf32>
    %200 = vector.shape_cast %197 : vector<8x16xf32> to vector<1x8x16xf32>
    tpu.vector_store %arg5[%c0_162, %c0_163, %c176_164], %200 {strides = array<i32>} : memref<1x8x256xf32, #tpu.memory_space<vmem>>, vector<1x8x16xf32>,
    %201 = vector.extract_strided_slice %152 {offsets = [0, 216], sizes = [8, 16], strides = [1, 1]} : vector<8x286xf32> to vector<8x16xf32>
    %c0_165 = arith.constant 0 : index
    %c0_166 = arith.constant 0 : index
    %c192_167 = arith.constant 192 : index
    %202 = vector.load %arg5[%c0_165, %c0_166, %c192_167] : memref<1x8x256xf32, #tpu.memory_space<vmem>>, vector<1x8x16xf32>
    %203 = vector.shape_cast %202 : vector<1x8x16xf32> to vector<8x16xf32>
    %204 = vector.shape_cast %201 : vector<8x16xf32> to vector<1x8x16xf32>
    tpu.vector_store %arg5[%c0_165, %c0_166, %c192_167], %204 {strides = array<i32>} : memref<1x8x256xf32, #tpu.memory_space<vmem>>, vector<1x8x16xf32>,
    %205 = vector.extract_strided_slice %152 {offsets = [0, 234], sizes = [8, 16], strides = [1, 1]} : vector<8x286xf32> to vector<8x16xf32>
    %c0_168 = arith.constant 0 : index
    %c0_169 = arith.constant 0 : index
    %c208_170 = arith.constant 208 : index
    %206 = vector.load %arg5[%c0_168, %c0_169, %c208_170] : memref<1x8x256xf32, #tpu.memory_space<vmem>>, vector<1x8x16xf32>
    %207 = vector.shape_cast %206 : vector<1x8x16xf32> to vector<8x16xf32>
    %208 = vector.shape_cast %205 : vector<8x16xf32> to vector<1x8x16xf32>
    tpu.vector_store %arg5[%c0_168, %c0_169, %c208_170], %208 {strides = array<i32>} : memref<1x8x256xf32, #tpu.memory_space<vmem>>, vector<1x8x16xf32>,
    %209 = vector.extract_strided_slice %152 {offsets = [0, 252], sizes = [8, 16], strides = [1, 1]} : vector<8x286xf32> to vector<8x16xf32>
    %c0_171 = arith.constant 0 : index
    %c0_172 = arith.constant 0 : index
    %c224_173 = arith.constant 224 : index
    %210 = vector.load %arg5[%c0_171, %c0_172, %c224_173] : memref<1x8x256xf32, #tpu.memory_space<vmem>>, vector<1x8x16xf32>
    %211 = vector.shape_cast %210 : vector<1x8x16xf32> to vector<8x16xf32>
    %212 = vector.shape_cast %209 : vector<8x16xf32> to vector<1x8x16xf32>
    tpu.vector_store %arg5[%c0_171, %c0_172, %c224_173], %212 {strides = array<i32>} : memref<1x8x256xf32, #tpu.memory_space<vmem>>, vector<1x8x16xf32>,
    %213 = vector.extract_strided_slice %152 {offsets = [0, 270], sizes = [8, 16], strides = [1, 1]} : vector<8x286xf32> to vector<8x16xf32>
    %c0_174 = arith.constant 0 : index
    %c0_175 = arith.constant 0 : index
    %c240_176 = arith.constant 240 : index
    %214 = vector.load %arg5[%c0_174, %c0_175, %c240_176] : memref<1x8x256xf32, #tpu.memory_space<vmem>>, vector<1x8x16xf32>
    %215 = vector.shape_cast %214 : vector<1x8x16xf32> to vector<8x16xf32>
    %216 = vector.shape_cast %213 : vector<8x16xf32> to vector<1x8x16xf32>
    tpu.vector_store %arg5[%c0_174, %c0_175, %c240_176], %216 {strides = array<i32>} : memref<1x8x256xf32, #tpu.memory_space<vmem>>, vector<1x8x16xf32>,
    return
  }
  func.func @transform_0(%arg0: i32) -> (i32, i32, i32) {
    %c0_i32 = arith.constant 0 : i32
    %c0_i32_0 = arith.constant 0 : i32
    %c0_i32_1 = arith.constant 0 : i32
    return %arg0, %c0_i32, %c0_i32_0 : i32, i32, i32
  }
  func.func @transform_1(%arg0: i32) -> (i32, i32, i32) {
    %c0_i32 = arith.constant 0 : i32
    %c0_i32_0 = arith.constant 0 : i32
    %c0_i32_1 = arith.constant 0 : i32
    %c0_i32_2 = arith.constant 0 : i32
    return %c0_i32, %c0_i32_0, %c0_i32_1 : i32, i32, i32
  }
  func.func @transform_2(%arg0: i32) -> (i32, i32) {
    %c0_i32 = arith.constant 0 : i32
    %c0_i32_0 = arith.constant 0 : i32
    %c0_i32_1 = arith.constant 0 : i32
    return %c0_i32, %c0_i32_0 : i32, i32
  }
  func.func @transform_3(%arg0: i32) -> i32 {
    %c0_i32 = arith.constant 0 : i32
    %c0_i32_0 = arith.constant 0 : i32
    return %c0_i32 : i32
  }
  func.func @transform_4(%arg0: i32) -> (i32, i32, i32) {
    %c0_i32 = arith.constant 0 : i32
    %c0_i32_0 = arith.constant 0 : i32
    %c0_i32_1 = arith.constant 0 : i32
    return %arg0, %c0_i32, %c0_i32_0 : i32, i32, i32
  }
}

</mosaic_0001>

<llo_original>
// kernel: conv_block.1
$region0: #{conv_block.1}
  #allocation0 [shape = 'u32[]', space=smem, size = 0x4, offset = 0x4, fixed_abs, tag = 'smem constant byte address 0x4 - core index']
  #allocation1 [shape = 'u32[144,128]{1,0:T(1,128)}', space=vmem, size = 0x12000, scoped, tag = 'internal scratch']
  #allocation2 [shape = 'bf16[4,324]{1,0:T(4,128)(2,1)}', space=vmem, size = 0xc00, scoped, tag = 'scratch operand']
  #allocation3 [shape = 'f32[1]{0:T(128)S(6)}', space=smem, size = 0x200, scoped, tag = 'scoped memory for conv_block.1']
  %s0 = inlined_call_operand.vmem [shape: f32[2,4,256], index: 0, kind: input, shape index: {}]
  %s1 = inlined_call_operand.vmem [shape: bf16[9,8,4], index: 1, kind: input, shape index: {}]
  %s2 = inlined_call_operand.vmem [shape: f32[8,1], index: 2, kind: input, shape index: {}]
  %s3 = inlined_call_operand.<no memory space> [shape: f32[1], index: 3, kind: input, shape index: {}]
  %s4 = inlined_call_operand.vmem [shape: f32[2,8,256], index: 4, kind: output, shape index: {}]
  %s5 = sld [smem:[#allocation0]]
  $region49: #{conv_block.1} parent=0
    _
  %s7 = ssub.s32 1, %s5
  %s8 = scalar_select 0, %s7, %s5
  %9 = sst [smem:[#allocation3]] %s3
  loop: start=0, step=1, limit=4
  $region2: #{conv_block.1} parent=0 // loop_pre_header
    _
  $region3: #{conv_block.1} parent=0 // loop_header
    %s11 = sphi 0, %s15
    %p12 = scmp.ge.s32.totalorder %s11, 4
    %s21 = sphi 0, %s23
    %s24 = sphi 0, %s21
    %s25 = sphi 0, %s24
    %s41 = sphi 0, %s25
    %s45 = sphi 0, %s45
    %s47 = sphi 0, %s45
    %s48 = sphi 0, %s47
    %s62 = sphi 0, %s48
    %s66 = sphi 0, %s66
    %s68 = sphi 0, %s66
    %s69 = sphi 0, %s68
    %s83 = sphi 0, %s69
    %s87 = sphi 0, %s87
    %s89 = sphi 0, %s87
    %s90 = sphi 0, %s89
    %s104 = sphi 0, %s90
    %s110 = sphi 0, %s112
    %s113 = sphi 0, %s110
    %s114 = sphi 0, %s113
    %s130 = sphi 0, %s114
  $region4: #{conv_block.1} parent=0 // loop_header_branch
    %14 = sbr.rel (%p12) target = $region8
  $region5: #{conv_block.1} parent=0 // loop_body
    %s16 = ssub.s32 %s11, 1
    %s17 = ssub.s32 %s11, 2
    %s18 = sadd.s32 %s11, 1
    %s19 = ssub.s32 %s11, %s18
    %p20 = scmp.eq.s32.totalorder %s19, 0
    %s22 = sadd.s32 %s21, 1
    %s23 = scalar_select %p20, %s21, %s22
    %p26 = pneg %p20
    %p27 = scmp.eq.s32.totalorder %s11, 1
    %p28 = por %p26, %p27
    %p29 = scmp.ne.s32.totalorder %s21, %s24
    %p30 = scmp.eq.s32.totalorder %s11, 0
    %p31 = por %p29, %p30
    %p32 = scmp.ne.s32.totalorder %s21, %s24
    %p33 = scmp.eq.s32.totalorder %s16, 1
    %p34 = por %p32, %p33
    %p35 = scmp.ne.s32.totalorder %s24, %s25
    %p36 = scmp.eq.s32.totalorder %s16, 0
    %p37 = por %p35, %p36
    %p38 = scmp.ne.s32.totalorder %s24, %s25
    %p39 = scmp.eq.s32.totalorder %s17, 1
    %p40 = por %p38, %p39
    %p42 = scmp.ne.s32.totalorder %s25, %s41
    %p43 = scmp.eq.s32.totalorder %s17, 0
    %p44 = por %p42, %p43
    %s46 = sadd.s32 %s45, 1
    %p49 = scmp.eq.s32.totalorder %s11, 1
    %p50 = scmp.ne.s32.totalorder %s45, %s47
    %p51 = scmp.eq.s32.totalorder %s11, 0
    %p52 = por %p50, %p51
    %p53 = scmp.ne.s32.totalorder %s45, %s47
    %p54 = scmp.eq.s32.totalorder %s16, 1
    %p55 = por %p53, %p54
    %p56 = scmp.ne.s32.totalorder %s47, %s48
    %p57 = scmp.eq.s32.totalorder %s16, 0
    %p58 = por %p56, %p57
    %p59 = scmp.ne.s32.totalorder %s47, %s48
    %p60 = scmp.eq.s32.totalorder %s17, 1
    %p61 = por %p59, %p60
    %p63 = scmp.ne.s32.totalorder %s48, %s62
    %p64 = scmp.eq.s32.totalorder %s17, 0
    %p65 = por %p63, %p64
    %s67 = sadd.s32 %s66, 1
    %p70 = scmp.eq.s32.totalorder %s11, 1
    %p71 = scmp.ne.s32.totalorder %s66, %s68
    %p72 = scmp.eq.s32.totalorder %s11, 0
    %p73 = por %p71, %p72
    %p74 = scmp.ne.s32.totalorder %s66, %s68
    %p75 = scmp.eq.s32.totalorder %s16, 1
    %p76 = por %p74, %p75
    %p77 = scmp.ne.s32.totalorder %s68, %s69
    %p78 = scmp.eq.s32.totalorder %s16, 0
    %p79 = por %p77, %p78
    %p80 = scmp.ne.s32.totalorder %s68, %s69
    %p81 = scmp.eq.s32.totalorder %s17, 1
    %p82 = por %p80, %p81
    %p84 = scmp.ne.s32.totalorder %s69, %s83
    %p85 = scmp.eq.s32.totalorder %s17, 0
    %p86 = por %p84, %p85
    %s88 = sadd.s32 %s87, 1
    %p91 = scmp.eq.s32.totalorder %s11, 1
    %p92 = scmp.ne.s32.totalorder %s87, %s89
    %p93 = scmp.eq.s32.totalorder %s11, 0
    %p94 = por %p92, %p93
    %p95 = scmp.ne.s32.totalorder %s87, %s89
    %p96 = scmp.eq.s32.totalorder %s16, 1
    %p97 = por %p95, %p96
    %p98 = scmp.ne.s32.totalorder %s89, %s90
    %p99 = scmp.eq.s32.totalorder %s16, 0
    %p100 = por %p98, %p99
    %p101 = scmp.ne.s32.totalorder %s89, %s90
    %p102 = scmp.eq.s32.totalorder %s17, 1
    %p103 = por %p101, %p102
    %p105 = scmp.ne.s32.totalorder %s90, %s104
    %p106 = scmp.eq.s32.totalorder %s17, 0
    %p107 = por %p105, %p106
    %s108 = ssub.s32 %s11, %s18
    %p109 = scmp.eq.s32.totalorder %s108, 0
    %s111 = sadd.s32 %s110, 1
    %s112 = scalar_select %p109, %s110, %s111
    %p115 = pneg %p109
    %p116 = scmp.eq.s32.totalorder %s11, 1
    %p117 = por %p115, %p116
    %p118 = scmp.ne.s32.totalorder %s110, %s113
    %p119 = scmp.eq.s32.totalorder %s11, 0
    %p120 = por %p118, %p119
    %p121 = scmp.ne.s32.totalorder %s110, %s113
    %p122 = scmp.eq.s32.totalorder %s16, 1
    %p123 = por %p121, %p122
    %p124 = scmp.ne.s32.totalorder %s113, %s114
    %p125 = scmp.eq.s32.totalorder %s16, 0
    %p126 = por %p124, %p125
    %p127 = scmp.ne.s32.totalorder %s113, %s114
    %p128 = scmp.eq.s32.totalorder %s17, 1
    %p129 = por %p127, %p128
    %p131 = scmp.ne.s32.totalorder %s114, %s130
    %p132 = scmp.eq.s32.totalorder %s17, 0
    %p133 = por %p131, %p132
    %p134 = scmp.le.s32.totalorder 1, %s11
    %p135 = scmp.lt.s32.totalorder %s11, 3
    %p136 = pnand %p134, %p135
    %p137 = pneg %p136
    // Predicated region
    $region9: #{conv_block.1} parent=5 // pred_check
      _
    $region10: #{conv_block.1} parent=5 // pred_check_branch
      %139 = sbr.rel (%p136) target = $region12
    $region11: #{conv_block.1} parent=5 // pred_region
      %s140 = ssub.s32 %s11, 1
      // Predicated region
      $region13: #{conv_block.1} parent=11 // pred_check
        %p141 = pneg %p58
      $region14: #{conv_block.1} parent=11 // pred_check_branch
        %143 = sbr.rel (%p141) target = $region16
      $region15: #{conv_block.1} parent=11 // pred_region
        _
      $region16: #{conv_block.1} parent=11 // pred_fallthru
        _
      // Predicated region
      $region17: #{conv_block.1} parent=11 // pred_check
        %p144 = pneg %p79
      $region18: #{conv_block.1} parent=11 // pred_check_branch
        %146 = sbr.rel (%p144) target = $region20
      $region19: #{conv_block.1} parent=11 // pred_region
        _
      $region20: #{conv_block.1} parent=11 // pred_fallthru
        _
      // Predicated region
      $region21: #{conv_block.1} parent=11 // pred_check
        %p147 = pneg %p100
      $region22: #{conv_block.1} parent=11 // pred_check_branch
        %149 = sbr.rel (%p147) target = $region24
      $region23: #{conv_block.1} parent=11 // pred_region
        _
      $region24: #{conv_block.1} parent=11 // pred_fallthru
        _
    $region12: #{conv_block.1} parent=5 // pred_fallthru
      _
    %p150 = scmp.lt.s32.totalorder %s11, 2
    // Predicated region
    $region25: #{conv_block.1} parent=5 // pred_check
      %p151 = pneg %p150
    $region26: #{conv_block.1} parent=5 // pred_check_branch
      %153 = sbr.rel (%p151) target = $region28
    $region27: #{conv_block.1} parent=5 // pred_region
      // Predicated region
      $region29: #{conv_block.1} parent=27 // pred_check
        %p154 = pneg %p31
      $region30: #{conv_block.1} parent=27 // pred_check_branch
        %156 = sbr.rel (%p154) target = $region32
      $region31: #{conv_block.1} parent=27 // pred_region
        %p157 = scmp.lt.s32.totalorder %s11, 1
        %s158 = scalar_select %p157, %s11, 1
        %s159 = smul.addr %s158, 2
        %s160 = smul.addr %s159, 4
        %s161 = scalar_lea.vmem %s0, %s160
      $region32: #{conv_block.1} parent=27 // pred_fallthru
        _
    $region28: #{conv_block.1} parent=5 // pred_fallthru
      _
    %p162 = scmp.le.s32.totalorder 1, %s11
    %p163 = scmp.lt.s32.totalorder %s11, 3
    %p164 = pnand %p162, %p163
    %p165 = pneg %p164
    // Predicated region
    $region33: #{conv_block.1} parent=5 // pred_check
      _
    $region34: #{conv_block.1} parent=5 // pred_check_branch
      %167 = sbr.rel (%p164) target = $region36
    $region35: #{conv_block.1} parent=5 // pred_region
      %s168 = ssub.s32 %s11, 1
      %p169 = scmp.lt.s32.totalorder %s16, 1
      %s170 = scalar_select %p169, %s16, 1
      %s171 = smul.addr %s170, 2
      %s172 = smul.addr %s171, 4
      %s173 = scalar_lea.vmem %s0, %s172
      %p174 = pneg %p37
      %p175 = pneg %p34
      %p176 = pneg %p58
      %p177 = pneg %p55
      %p178 = pneg %p79
      %p179 = pneg %p76
      %p180 = pneg %p100
      %p181 = pneg %p97
      %p182 = pneg %p126
      %p183 = pneg %p123
      %p184 = scmp.lt.s32.totalorder %s16, 1
      %s185 = scalar_select %p184, %s16, 1
      %s186 = smul.addr %s185, 2
      %s187 = smul.addr %s186, 8
      %s188 = scalar_lea.vmem %s4, %s187
      %p189 = scmp.lt.s32.totalorder %s16, 1
      %s190 = scalar_select %p189, %s16, 1
      %s191 = smul.addr %s190, 2
      %s192 = smul.addr %s191, 4
      %s193 = scalar_lea.vmem %s0, %s192
      %p194 = scmp.lt.s32.totalorder %s16, 1
      %s195 = scalar_select %p194, %s16, 1
      %s196 = smul.addr %s195, 2
      %s197 = smul.addr %s196, 8
      %s198 = scalar_lea.vmem %s4, %s197
      %vm200 = vcmask 148480
      %201 = vst.msk [vmem:[#allocation2] sm:$0x3] %vm200, 0
      %vm202 = vcmask 550280
      %203 = vst.msk [vmem:[#allocation2 + $0x4] sm:$0x3] %vm202, 0
      %v204 = vld [vmem:[%s193] sm:$0xf]
      %v205 = vpack.c.bf16 %v204, %v204
      %v208 = vunpack.c.l.s4 1983009808
      %v209 = vunpack.c.0.s8 %v208
      %v210 = vlaneseq
      %v211 = vshrl.u32 %v210, 7
      %v212 = vsub.s32 %v209, %v211
      %v213 = vrot.slane %v205, %v212
      %214 = vrot.lane.b32.xlu0 %v213, 19
      %v215 = vpop.permute.xlu0 %214
      %vm217 = vcmask 279704
      %218 = vst.msk [vmem:[#allocation2] sm:$0x3] %vm217, %v215
      %vm219 = vcmask 296216
      %220 = vst.msk [vmem:[#allocation2] sm:$0x3] %vm219, 0
      %v221 = vld [vmem:[%s193] sm:$0xf]
      %v222 = vpack.c.bf16 %v221, %v221
      %v225 = vunpack.c.l.s4 1983009808
      %v226 = vunpack.c.0.s8 %v225
      %v227 = vlaneseq
      %v228 = vshrl.u32 %v227, 7
      %v229 = vsub.s32 %v226, %v228
      %v230 = vrot.slane %v222, %v229
      %231 = vrot.lane.b32.xlu0 %v230, 21
      %v232 = vpop.permute.xlu0 %231
      %vm234 = vcmask 427304
      %235 = vst.msk [vmem:[#allocation2] sm:$0x3] %vm234, %v232
      %vm236 = vcmask 443816
      %237 = vst.msk [vmem:[#allocation2] sm:$0x3] %vm236, 0
      %v238 = vld [vmem:[%s193] sm:$0xf]
      %v239 = vpack.c.bf16 %v238, %v238
      %v242 = vunpack.c.l.s4 1983009808
      %v243 = vunpack.c.0.s8 %v242
      %v244 = vlaneseq
      %v245 = vshrl.u32 %v244, 7
      %v246 = vsub.s32 %v243, %v245
      %v247 = vrot.slane %v239, %v246
      %248 = vrot.lane.b32.xlu0 %v247, 23
      %v249 = vpop.permute.xlu0 %248
      %vm251 = vcmask 574904
      %252 = vst.msk [vmem:[#allocation2] sm:$0x3] %vm251, %v249
      %vm253 = vcmask 591416
      %254 = vst.msk [vmem:[#allocation2] sm:$0x3] %vm253, 0
      %v255 = vld [vmem:[%s193] sm:$0xf]
      %v256 = vpack.c.bf16 %v255, %v255
      %v259 = vunpack.c.l.s4 1983009808
      %v260 = vunpack.c.0.s8 %v259
      %v261 = vlaneseq
      %v262 = vshrl.u32 %v261, 7
      %v263 = vsub.s32 %v260, %v262
      %v264 = vrot.slane %v256, %v263
      %265 = vrot.lane.b32.xlu0 %v264, 25
      %v266 = vpop.permute.xlu0 %265
      %vm268 = vcmask 722504
      %269 = vst.msk [vmem:[#allocation2] sm:$0x3] %vm268, %v266
      %vm270 = vcmask 739016
      %271 = vst.msk [vmem:[#allocation2] sm:$0x3] %vm270, 0
      %v272 = vld [vmem:[%s193] sm:$0xf]
      %v273 = vpack.c.bf16 %v272, %v272
      %v276 = vunpack.c.l.s4 1983009808
      %v277 = vunpack.c.0.s8 %v276
      %v278 = vlaneseq
      %v279 = vshrl.u32 %v278, 7
      %v280 = vsub.s32 %v277, %v279
      %v281 = vrot.slane %v273, %v280
      %282 = vrot.lane.b32.xlu0 %v281, 27
      %v283 = vpop.permute.xlu0 %282
      %vm285 = vcmask 870104
      %286 = vst.msk [vmem:[#allocation2] sm:$0x3] %vm285, %v283
      %vm287 = vcmask 886616
      %288 = vst.msk [vmem:[#allocation2] sm:$0x3] %vm287, 0
      %v289 = vld [vmem:[%s193] sm:$0xf]
      %v290 = vpack.c.bf16 %v289, %v289
      %v293 = vunpack.c.l.s4 1983009808
      %v294 = vunpack.c.0.s8 %v293
      %v295 = vlaneseq
      %v296 = vshrl.u32 %v295, 7
      %v297 = vsub.s32 %v294, %v296
      %v298 = vrot.slane %v290, %v297
      %299 = vrot.lane.b32.xlu0 %v298, 29
      %v300 = vpop.permute.xlu0 %299
      %vm302 = vcmask 1017704
      %303 = vst.msk [vmem:[#allocation2] sm:$0x3] %vm302, %v300
      %vm304 = vcmask 1034216
      %305 = vst.msk [vmem:[#allocation2] sm:$0x3] %vm304, 0
      %v306 = vld [vmem:[%s193] sm:$0xf]
      %v307 = vpack.c.bf16 %v306, %v306
      %v310 = vunpack.c.l.s4 1983009808
      %v311 = vunpack.c.0.s8 %v310
      %v312 = vlaneseq
      %v313 = vshrl.u32 %v312, 7
      %v314 = vsub.s32 %v311, %v313
      %v315 = vrot.slane %v307, %v314
      %316 = vrot.lane.b32.xlu0 %v315, 31
      %v317 = vpop.permute.xlu0 %316
      %v318 = vrot.slane %v317, 6
      %vm319 = vcmask 252928
      %v320 = vsel %vm319, %v318, %v317
      %vm322 = vcmask 1042424
      %vm323 = vcmask 117762
      %vm324 = vmor %vm323, %vm322
      %325 = vst.msk [vmem:[#allocation2] sm:$0xf] %vm324, %v320
      %vm326 = vcmask 132216
      %327 = vst.msk [vmem:[#allocation2 + $0x2] sm:$0x3] %vm326, 0
      %v328 = vld [vmem:[%s193] sm:$0xf]
      %v329 = vpack.c.bf16 %v328, %v328
      %v332 = vunpack.c.l.s4 1983009808
      %v333 = vunpack.c.0.s8 %v332
      %v334 = vlaneseq
      %v335 = vshrl.u32 %v334, 7
      %v336 = vsub.s32 %v333, %v335
      %v337 = vrot.slane %v329, %v336
      %338 = vrot.lane.b32.xlu0 %v337, 33
      %v339 = vpop.permute.xlu0 %338
      %vm341 = vcmask 263304
      %342 = vst.msk [vmem:[#allocation2 + $0x2] sm:$0x3] %vm341, %v339
      %vm343 = vcmask 279816
      %344 = vst.msk [vmem:[#allocation2 + $0x2] sm:$0x3] %vm343, 0
      %v345 = vld [vmem:[%s193 + $0x4] sm:$0xf]
      %v346 = vpack.c.bf16 %v345, %v345
      %v349 = vunpack.c.l.s4 1983009808
      %v350 = vunpack.c.0.s8 %v349
      %v351 = vlaneseq
      %v352 = vshrl.u32 %v351, 7
      %v353 = vsub.s32 %v350, %v352
      %v354 = vrot.slane %v346, %v353
      %355 = vrot.lane.b32.xlu0 %v354, 35
      %v356 = vpop.permute.xlu0 %355
      %vm358 = vcmask 410904
      %359 = vst.msk [vmem:[#allocation2 + $0x2] sm:$0x3] %vm358, %v356
      %vm360 = vcmask 427416
      %361 = vst.msk [vmem:[#allocation2 + $0x2] sm:$0x3] %vm360, 0
      %v362 = vld [vmem:[%s193 + $0x4] sm:$0xf]
      %v363 = vpack.c.bf16 %v362, %v362
      %v366 = vunpack.c.l.s4 1983009808
      %v367 = vunpack.c.0.s8 %v366
      %v368 = vlaneseq
      %v369 = vshrl.u32 %v368, 7
      %v370 = vsub.s32 %v367, %v369
      %v371 = vrot.slane %v363, %v370
      %372 = vrot.lane.b32.xlu0 %v371, 37
      %v373 = vpop.permute.xlu0 %372
      %vm375 = vcmask 558504
      %376 = vst.msk [vmem:[#allocation2 + $0x2] sm:$0x3] %vm375, %v373
      %vm377 = vcmask 575016
      %378 = vst.msk [vmem:[#allocation2 + $0x2] sm:$0x3] %vm377, 0
      %v379 = vld [vmem:[%s193 + $0x4] sm:$0xf]
      %v380 = vpack.c.bf16 %v379, %v379
      %v383 = vunpack.c.l.s4 1983009808
      %v384 = vunpack.c.0.s8 %v383
      %v385 = vlaneseq
      %v386 = vshrl.u32 %v385, 7
      %v387 = vsub.s32 %v384, %v386
      %v388 = vrot.slane %v380, %v387
      %389 = vrot.lane.b32.xlu0 %v388, 39
      %v390 = vpop.permute.xlu0 %389
      %vm392 = vcmask 706104
      %393 = vst.msk [vmem:[#allocation2 + $0x2] sm:$0x3] %vm392, %v390
      %vm394 = vcmask 722616
      %395 = vst.msk [vmem:[#allocation2 + $0x2] sm:$0x3] %vm394, 0
      %v396 = vld [vmem:[%s193 + $0x4] sm:$0xf]
      %v397 = vpack.c.bf16 %v396, %v396
      %v400 = vunpack.c.l.s4 1983009808
      %v401 = vunpack.c.0.s8 %v400
      %v402 = vlaneseq
      %v403 = vshrl.u32 %v402, 7
      %v404 = vsub.s32 %v401, %v403
      %v405 = vrot.slane %v397, %v404
      %406 = vrot.lane.b32.xlu0 %v405, 41
      %v407 = vpop.permute.xlu0 %406
      %vm409 = vcmask 853704
      %410 = vst.msk [vmem:[#allocation2 + $0x2] sm:$0x3] %vm409, %v407
      %vm411 = vcmask 870216
      %412 = vst.msk [vmem:[#allocation2 + $0x2] sm:$0x3] %vm411, 0
      %v413 = vld [vmem:[%s193 + $0x4] sm:$0xf]
      %v414 = vpack.c.bf16 %v413, %v413
      %v417 = vunpack.c.l.s4 1983009808
      %v418 = vunpack.c.0.s8 %v417
      %v419 = vlaneseq
      %v420 = vshrl.u32 %v419, 7
      %v421 = vsub.s32 %v418, %v420
      %v422 = vrot.slane %v414, %v421
      %423 = vrot.lane.b32.xlu0 %v422, 43
      %v424 = vpop.permute.xlu0 %423
      %vm426 = vcmask 1001304
      %427 = vst.msk [vmem:[#allocation2 + $0x2] sm:$0x3] %vm426, %v424
      %vm428 = vcmask 1017816
      %429 = vst.msk [vmem:[#allocation2 + $0x2] sm:$0x3] %vm428, 0
      %v430 = vld [vmem:[%s193 + $0x4] sm:$0xf]
      %v431 = vpack.c.bf16 %v430, %v430
      %v434 = vunpack.c.l.s4 1983009808
      %v435 = vunpack.c.0.s8 %v434
      %v436 = vlaneseq
      %v437 = vshrl.u32 %v436, 7
      %v438 = vsub.s32 %v435, %v437
      %v439 = vrot.slane %v431, %v438
      %440 = vrot.lane.b32.xlu0 %v439, 45
      %v441 = vpop.permute.xlu0 %440
      %v442 = vrot.slane %v441, 6
      %vm443 = vcmask 367616
      %v444 = vsel %vm443, %v442, %v441
      %vm446 = vcmask 1042408
      %vm447 = vcmask 101378
      %vm448 = vmor %vm447, %vm446
      %449 = vst.msk [vmem:[#allocation2 + $0x2] sm:$0xf] %vm448, %v444
      %vm450 = vcmask 115816
      %451 = vst.msk [vmem:[#allocation2 + $0x4] sm:$0x3] %vm450, 0
      %v452 = vld [vmem:[%s193 + $0x4] sm:$0xf]
      %v453 = vpack.c.bf16 %v452, %v452
      %v456 = vunpack.c.l.s4 1983009808
      %v457 = vunpack.c.0.s8 %v456
      %v458 = vlaneseq
      %v459 = vshrl.u32 %v458, 7
      %v460 = vsub.s32 %v457, %v459
      %v461 = vrot.slane %v453, %v460
      %462 = vrot.lane.b32.xlu0 %v461, 47
      %v463 = vpop.permute.xlu0 %462
      %vm465 = vcmask 246904
      %466 = vst.msk [vmem:[#allocation2 + $0x4] sm:$0x3] %vm465, %v463
      %vm467 = vcmask 263416
      %468 = vst.msk [vmem:[#allocation2 + $0x4] sm:$0x3] %vm467, 0
      %v469 = vld [vmem:[%s193 + $0x4] sm:$0xf]
      %v470 = vpack.c.bf16 %v469, %v469
      %v473 = vunpack.c.l.s4 1983009808
      %v474 = vunpack.c.0.s8 %v473
      %v475 = vlaneseq
      %v476 = vshrl.u32 %v475, 7
      %v477 = vsub.s32 %v474, %v476
      %v478 = vrot.slane %v470, %v477
      %479 = vrot.lane.b32.xlu0 %v478, 49
      %v480 = vpop.permute.xlu0 %479
      %vm482 = vcmask 394504
      %483 = vst.msk [vmem:[#allocation2 + $0x4] sm:$0x3] %vm482, %v480
      %v484 = vld [vmem:[#allocation2] sm:$0x3f]
      %v485 = vld [vmem:[%s1] sm:$0xf]
      %s486 = scalar_lea.vmem %s1, 4
      %v487 = vld [vmem:[%s486] sm:$0xf]
      %v489 = vcombine.high %v484, %v484
      %v491 = vunpack.c.l.s4 1983009808
      %v492 = vunpack.c.0.s8 %v491
      %v493 = vlaneseq
      %v494 = vshrl.u32 %v493, 7
      %v495 = vsub.s32 %v492, %v494
      %v496 = vrot.slane %v484, %v495
      %v498 = vunpack.c.l.s4 1983009808
      %v499 = vunpack.c.0.s8 %v498
      %v500 = vlaneseq
      %v501 = vshrl.u32 %v500, 7
      %v502 = vsub.s32 %v499, %v501
      %v503 = vrot.slane %v489, %v502
      %v504 = vcombine.high %v496, %v496
      %505 = vrot.lane.b32.xlu0 %v496, 127
      %v506 = vpop.permute.xlu0 %505
      %507 = vrot.lane.b32.xlu0 %v504, 127
      %v508 = vpop.permute.xlu0 %507
      %509 = vrot.lane.b32.xlu0 %v503, 127
      %v510 = vpop.permute.xlu0 %509
      %vm511 = vcmask 1039360
      %v512 = vsel %vm511, %v506, %v508
      %v513 = vsel %vm511, %v508, %v510
      %vm514 = vcmask 31744
      %v516 = vsel %vm514, %v487, 0
      %vm518 = vcmask 1041408
      %v520 = vsel %vm518, %v512, 0
      %v523 = vsel %vm518, %v513, 0
      %v526 = vsel %vm518, %v510, 0
      %528 = vmatprep.subr.bf16.mxu0 %v523
      %529 = vmatpush1.bf16.msra.mxu0 %v520
      %530 = vmatprep.subr.bf16.mxu0 0
      %531 = vmatpush1.bf16.msra.mxu0 0
      %532 = vmatprep.subr.bf16.mxu0 0
      %533 = vmatpush1.bf16.msra.mxu0 0
      %534 = vmatprep.subr.bf16.mxu0 0
      %535 = vmatpush1.bf16.msra.mxu0 0
      %536 = vmatprep.subr.bf16.mxu0 0
      %537 = vmatpush1.bf16.msra.mxu0 0
      %538 = vmatprep.subr.bf16.mxu0 0
      %539 = vmatpush1.bf16.msra.mxu0 0
      %540 = vmatprep.subr.bf16.mxu0 0
      %541 = vmatpush1.bf16.msra.mxu0 0
      %542 = vmatprep.subr.bf16.mxu0 0
      %543 = vmatpush1.bf16.msra.mxu0 0
      %544 = vmatprep.subr.bf16.mxu0 0
      %545 = vmatpush1.bf16.msra.mxu0 0
      %546 = vmatprep.subr.bf16.mxu0 0
      %547 = vmatpush1.bf16.msra.mxu0 0
      %548 = vmatprep.subr.bf16.mxu0 0
      %549 = vmatpush1.bf16.msra.mxu0 0
      %550 = vmatprep.subr.bf16.mxu0 0
      %551 = vmatpush1.bf16.msra.mxu0 0
      %552 = vmatprep.subr.bf16.mxu0 0
      %553 = vmatpush1.bf16.msra.mxu0 0
      %554 = vmatprep.subr.bf16.mxu0 0
      %555 = vmatpush1.bf16.msra.mxu0 0
      %556 = vmatprep.subr.bf16.mxu0 0
      %557 = vmatpush1.bf16.msra.mxu0 0
      %558 = vmatprep.subr.bf16.mxu0 0
      %559 = vmatpush1.bf16.msra.mxu0 0
      %560 = vmatprep.mubr.bf16.mxu0 0
      %561 = vmatmul.mubr.bf16.gmra.mrb[0].mxu0 %v516
      %v562 = vpop.f32.mrb[0].mxu0
      %v563 = vadd.f32 0.0, %v562
      %v564 = vpop.f32.mrb[0].mxu0
      %v565 = vadd.f32 0.0, %v564
      %v566 = vpop.f32.mrb[0].mxu0
      %v567 = vpop.f32.mrb[0].mxu0
      %568 = vdwg.mxu0
      %569 = vmatprep.subr.bf16.mxu0 0
      %570 = vmatpush1.bf16.msra.mxu0 %v526
      %571 = vmatprep.subr.bf16.mxu0 0
      %572 = vmatpush1.bf16.msra.mxu0 0
      %573 = vmatprep.subr.bf16.mxu0 0
      %574 = vmatpush1.bf16.msra.mxu0 0
      %575 = vmatprep.subr.bf16.mxu0 0
      %576 = vmatpush1.bf16.msra.mxu0 0
      %577 = vmatprep.subr.bf16.mxu0 0
      %578 = vmatpush1.bf16.msra.mxu0 0
      %579 = vmatprep.subr.bf16.mxu0 0
      %580 = vmatpush1.bf16.msra.mxu0 0
      %581 = vmatprep.subr.bf16.mxu0 0
      %582 = vmatpush1.bf16.msra.mxu0 0
      %583 = vmatprep.subr.bf16.mxu0 0
      %584 = vmatpush1.bf16.msra.mxu0 0
      %585 = vmatprep.subr.bf16.mxu0 0
      %586 = vmatpush1.bf16.msra.mxu0 0
      %587 = vmatprep.subr.bf16.mxu0 0
      %588 = vmatpush1.bf16.msra.mxu0 0
      %589 = vmatprep.subr.bf16.mxu0 0
      %590 = vmatpush1.bf16.msra.mxu0 0
      %591 = vmatprep.subr.bf16.mxu0 0
      %592 = vmatpush1.bf16.msra.mxu0 0
      %593 = vmatprep.subr.bf16.mxu0 0
      %594 = vmatpush1.bf16.msra.mxu0 0
      %595 = vmatprep.subr.bf16.mxu0 0
      %596 = vmatpush1.bf16.msra.mxu0 0
      %597 = vmatprep.subr.bf16.mxu0 0
      %598 = vmatpush1.bf16.msra.mxu0 0
      %599 = vmatprep.subr.bf16.mxu0 0
      %600 = vmatpush1.bf16.msra.mxu0 0
      %601 = vmatprep.mubr.bf16.mxu0 0
      %602 = vmatmul.mubr.bf16.gmra.mrb[0].mxu0 %v516
      %v603 = vpop.f32.mrb[0].mxu0
      %v604 = vadd.f32 0.0, %v603
      %v605 = vpop.f32.mrb[0].mxu0
      %v606 = vpop.f32.mrb[0].mxu0
      %v607 = vpop.f32.mrb[0].mxu0
      %608 = vdwg.mxu0
      %v610 = vsel %vm514, %v485, 0
      %v613 = vsel %vm518, %v496, 0
      %v616 = vsel %vm518, %v504, 0
      %v619 = vsel %vm518, %v503, 0
      %621 = vmatprep.subr.bf16.mxu0 %v616
      %622 = vmatpush1.bf16.msra.mxu0 %v613
      %623 = vmatprep.subr.bf16.mxu0 0
      %624 = vmatpush1.bf16.msra.mxu0 0
      %625 = vmatprep.subr.bf16.mxu0 0
      %626 = vmatpush1.bf16.msra.mxu0 0
      %627 = vmatprep.subr.bf16.mxu0 0
      %628 = vmatpush1.bf16.msra.mxu0 0
      %629 = vmatprep.subr.bf16.mxu0 0
      %630 = vmatpush1.bf16.msra.mxu0 0
      %631 = vmatprep.subr.bf16.mxu0 0
      %632 = vmatpush1.bf16.msra.mxu0 0
      %633 = vmatprep.subr.bf16.mxu0 0
      %634 = vmatpush1.bf16.msra.mxu0 0
      %635 = vmatprep.subr.bf16.mxu0 0
      %636 = vmatpush1.bf16.msra.mxu0 0
      %637 = vmatprep.subr.bf16.mxu0 0
      %638 = vmatpush1.bf16.msra.mxu0 0
      %639 = vmatprep.subr.bf16.mxu0 0
      %640 = vmatpush1.bf16.msra.mxu0 0
      %641 = vmatprep.subr.bf16.mxu0 0
      %642 = vmatpush1.bf16.msra.mxu0 0
      %643 = vmatprep.subr.bf16.mxu0 0
      %644 = vmatpush1.bf16.msra.mxu0 0
      %645 = vmatprep.subr.bf16.mxu0 0
      %646 = vmatpush1.bf16.msra.mxu0 0
      %647 = vmatprep.subr.bf16.mxu0 0
      %648 = vmatpush1.bf16.msra.mxu0 0
      %649 = vmatprep.subr.bf16.mxu0 0
      %650 = vmatpush1.bf16.msra.mxu0 0
      %651 = vmatprep.subr.bf16.mxu0 0
      %652 = vmatpush1.bf16.msra.mxu0 0
      %653 = vmatprep.mubr.bf16.mxu0 0
      %654 = vmatmul.mubr.bf16.gmra.mrb[0].mxu0 %v610
      %v655 = vpop.f32.mrb[0].mxu0
      %v656 = vadd.f32 %v563, %v655
      %v657 = vpop.f32.mrb[0].mxu0
      %v658 = vadd.f32 %v565, %v657
      %v659 = vpop.f32.mrb[0].mxu0
      %v660 = vpop.f32.mrb[0].mxu0
      %661 = vdwg.mxu0
      %662 = vmatprep.subr.bf16.mxu0 0
      %663 = vmatpush1.bf16.msra.mxu0 %v619
      %664 = vmatprep.subr.bf16.mxu0 0
      %665 = vmatpush1.bf16.msra.mxu0 0
      %666 = vmatprep.subr.bf16.mxu0 0
      %667 = vmatpush1.bf16.msra.mxu0 0
      %668 = vmatprep.subr.bf16.mxu0 0
      %669 = vmatpush1.bf16.msra.mxu0 0
      %670 = vmatprep.subr.bf16.mxu0 0
      %671 = vmatpush1.bf16.msra.mxu0 0
      %672 = vmatprep.subr.bf16.mxu0 0
      %673 = vmatpush1.bf16.msra.mxu0 0
      %674 = vmatprep.subr.bf16.mxu0 0
      %675 = vmatpush1.bf16.msra.mxu0 0
      %676 = vmatprep.subr.bf16.mxu0 0
      %677 = vmatpush1.bf16.msra.mxu0 0
      %678 = vmatprep.subr.bf16.mxu0 0
      %679 = vmatpush1.bf16.msra.mxu0 0
      %680 = vmatprep.subr.bf16.mxu0 0
      %681 = vmatpush1.bf16.msra.mxu0 0
      %682 = vmatprep.subr.bf16.mxu0 0
      %683 = vmatpush1.bf16.msra.mxu0 0
      %684 = vmatprep.subr.bf16.mxu0 0
      %685 = vmatpush1.bf16.msra.mxu0 0
      %686 = vmatprep.subr.bf16.mxu0 0
      %687 = vmatpush1.bf16.msra.mxu0 0
      %688 = vmatprep.subr.bf16.mxu0 0
      %689 = vmatpush1.bf16.msra.mxu0 0
      %690 = vmatprep.subr.bf16.mxu0 0
      %691 = vmatpush1.bf16.msra.mxu0 0
      %692 = vmatprep.subr.bf16.mxu0 0
      %693 = vmatpush1.bf16.msra.mxu0 0
      %694 = vmatprep.mubr.bf16.mxu0 0
      %695 = vmatmul.mubr.bf16.gmra.mrb[0].mxu0 %v610
      %v696 = vpop.f32.mrb[0].mxu0
      %v697 = vadd.f32 %v604, %v696
      %v698 = vpop.f32.mrb[0].mxu0
      %v699 = vpop.f32.mrb[0].mxu0
      %v700 = vpop.f32.mrb[0].mxu0
      %701 = vdwg.mxu0
      %v702 = vld [vmem:[#allocation2] sm:$0x3f]
      %s703 = scalar_lea.vmem %s1, 8
      %v704 = vld [vmem:[%s703] sm:$0xf]
      %v706 = vcombine.high %v702, %v702
      %v708 = vunpack.c.l.s4 1983009808
      %v709 = vunpack.c.0.s8 %v708
      %v710 = vlaneseq
      %v711 = vshrl.u32 %v710, 7
      %v712 = vsub.s32 %v709, %v711
      %v713 = vrot.slane %v702, %v712
      %v715 = vunpack.c.l.s4 1983009808
      %v716 = vunpack.c.0.s8 %v715
      %v717 = vlaneseq
      %v718 = vshrl.u32 %v717, 7
      %v719 = vsub.s32 %v716, %v718
      %v720 = vrot.slane %v706, %v719
      %v721 = vcombine.high %v713, %v713
      %722 = vrot.lane.b32.xlu0 %v713, 126
      %v723 = vpop.permute.xlu0 %722
      %724 = vrot.lane.b32.xlu0 %v721, 126
      %v725 = vpop.permute.xlu0 %724
      %726 = vrot.lane.b32.xlu0 %v720, 126
      %v727 = vpop.permute.xlu0 %726
      %vm728 = vcmask 1031168
      %v729 = vsel %vm728, %v723, %v725
      %v730 = vsel %vm728, %v725, %v727
      %v732 = vsel %vm514, %v704, 0
      %v735 = vsel %vm518, %v729, 0
      %v738 = vsel %vm518, %v730, 0
      %v741 = vsel %vm518, %v727, 0
      %743 = vmatprep.subr.bf16.mxu0 %v738
      %744 = vmatpush1.bf16.msra.mxu0 %v735
      %745 = vmatprep.subr.bf16.mxu0 0
      %746 = vmatpush1.bf16.msra.mxu0 0
      %747 = vmatprep.subr.bf16.mxu0 0
      %748 = vmatpush1.bf16.msra.mxu0 0
      %749 = vmatprep.subr.bf16.mxu0 0
      %750 = vmatpush1.bf16.msra.mxu0 0
      %751 = vmatprep.subr.bf16.mxu0 0
      %752 = vmatpush1.bf16.msra.mxu0 0
      %753 = vmatprep.subr.bf16.mxu0 0
      %754 = vmatpush1.bf16.msra.mxu0 0
      %755 = vmatprep.subr.bf16.mxu0 0
      %756 = vmatpush1.bf16.msra.mxu0 0
      %757 = vmatprep.subr.bf16.mxu0 0
      %758 = vmatpush1.bf16.msra.mxu0 0
      %759 = vmatprep.subr.bf16.mxu0 0
      %760 = vmatpush1.bf16.msra.mxu0 0
      %761 = vmatprep.subr.bf16.mxu0 0
      %762 = vmatpush1.bf16.msra.mxu0 0
      %763 = vmatprep.subr.bf16.mxu0 0
      %764 = vmatpush1.bf16.msra.mxu0 0
      %765 = vmatprep.subr.bf16.mxu0 0
      %766 = vmatpush1.bf16.msra.mxu0 0
      %767 = vmatprep.subr.bf16.mxu0 0
      %768 = vmatpush1.bf16.msra.mxu0 0
      %769 = vmatprep.subr.bf16.mxu0 0
      %770 = vmatpush1.bf16.msra.mxu0 0
      %771 = vmatprep.subr.bf16.mxu0 0
      %772 = vmatpush1.bf16.msra.mxu0 0
      %773 = vmatprep.subr.bf16.mxu0 0
      %774 = vmatpush1.bf16.msra.mxu0 0
      %775 = vmatprep.mubr.bf16.mxu0 0
      %776 = vmatmul.mubr.bf16.gmra.mrb[0].mxu0 %v732
      %v777 = vpop.f32.mrb[0].mxu0
      %v778 = vadd.f32 0.0, %v777
      %v779 = vpop.f32.mrb[0].mxu0
      %v780 = vadd.f32 0.0, %v779
      %v781 = vpop.f32.mrb[0].mxu0
      %v782 = vpop.f32.mrb[0].mxu0
      %783 = vdwg.mxu0
      %784 = vmatprep.subr.bf16.mxu0 0
      %785 = vmatpush1.bf16.msra.mxu0 %v741
      %786 = vmatprep.subr.bf16.mxu0 0
      %787 = vmatpush1.bf16.msra.mxu0 0
      %788 = vmatprep.subr.bf16.mxu0 0
      %789 = vmatpush1.bf16.msra.mxu0 0
      %790 = vmatprep.subr.bf16.mxu0 0
      %791 = vmatpush1.bf16.msra.mxu0 0
      %792 = vmatprep.subr.bf16.mxu0 0
      %793 = vmatpush1.bf16.msra.mxu0 0
      %794 = vmatprep.subr.bf16.mxu0 0
      %795 = vmatpush1.bf16.msra.mxu0 0
      %796 = vmatprep.subr.bf16.mxu0 0
      %797 = vmatpush1.bf16.msra.mxu0 0
      %798 = vmatprep.subr.bf16.mxu0 0
      %799 = vmatpush1.bf16.msra.mxu0 0
      %800 = vmatprep.subr.bf16.mxu0 0
      %801 = vmatpush1.bf16.msra.mxu0 0
      %802 = vmatprep.subr.bf16.mxu0 0
      %803 = vmatpush1.bf16.msra.mxu0 0
      %804 = vmatprep.subr.bf16.mxu0 0
      %805 = vmatpush1.bf16.msra.mxu0 0
      %806 = vmatprep.subr.bf16.mxu0 0
      %807 = vmatpush1.bf16.msra.mxu0 0
      %808 = vmatprep.subr.bf16.mxu0 0
      %809 = vmatpush1.bf16.msra.mxu0 0
      %810 = vmatprep.subr.bf16.mxu0 0
      %811 = vmatpush1.bf16.msra.mxu0 0
      %812 = vmatprep.subr.bf16.mxu0 0
      %813 = vmatpush1.bf16.msra.mxu0 0
      %814 = vmatprep.subr.bf16.mxu0 0
      %815 = vmatpush1.bf16.msra.mxu0 0
      %816 = vmatprep.mubr.bf16.mxu0 0
      %817 = vmatmul.mubr.bf16.gmra.mrb[0].mxu0 %v732
      %v818 = vpop.f32.mrb[0].mxu0
      %v819 = vadd.f32 0.0, %v818
      %v820 = vpop.f32.mrb[0].mxu0
      %v821 = vpop.f32.mrb[0].mxu0
      %v822 = vpop.f32.mrb[0].mxu0
      %823 = vdwg.mxu0
      %v824 = vadd.f32 %v656, %v778
      %v825 = vadd.f32 %v658, %v780
      %v826 = vadd.f32 %v697, %v819
      %v827 = vld [vmem:[#allocation2] sm:$0x3f]
      %s828 = scalar_lea.vmem %s1, 12
      %v829 = vld [vmem:[%s828] sm:$0xf]
      %v831 = vcombine.high %v827, %v827
      %v833 = vunpack.c.l.s4 1983009808
      %v834 = vunpack.c.0.s8 %v833
      %v835 = vlaneseq
      %v836 = vshrl.u32 %v835, 7
      %v837 = vsub.s32 %v834, %v836
      %v838 = vrot.slane %v827, %v837
      %v840 = vunpack.c.l.s4 1983009808
      %v841 = vunpack.c.0.s8 %v840
      %v842 = vlaneseq
      %v843 = vshrl.u32 %v842, 7
      %v844 = vsub.s32 %v841, %v843
      %v845 = vrot.slane %v831, %v844
      %v846 = vcombine.high %v838, %v838
      %847 = vrot.lane.b32.xlu0 %v838, 110
      %v848 = vpop.permute.xlu0 %847
      %849 = vrot.lane.b32.xlu0 %v846, 110
      %v850 = vpop.permute.xlu0 %849
      %851 = vrot.lane.b32.xlu0 %v845, 110
      %v852 = vpop.permute.xlu0 %851
      %vm853 = vcmask 900096
      %v854 = vsel %vm853, %v848, %v850
      %v855 = vsel %vm853, %v850, %v852
      %v857 = vsel %vm514, %v829, 0
      %v860 = vsel %vm518, %v854, 0
      %v863 = vsel %vm518, %v855, 0
      %v866 = vsel %vm518, %v852, 0
      %868 = vmatprep.subr.bf16.mxu0 %v863
      %869 = vmatpush1.bf16.msra.mxu0 %v860
      %870 = vmatprep.subr.bf16.mxu0 0
      %871 = vmatpush1.bf16.msra.mxu0 0
      %872 = vmatprep.subr.bf16.mxu0 0
      %873 = vmatpush1.bf16.msra.mxu0 0
      %874 = vmatprep.subr.bf16.mxu0 0
      %875 = vmatpush1.bf16.msra.mxu0 0
      %876 = vmatprep.subr.bf16.mxu0 0
      %877 = vmatpush1.bf16.msra.mxu0 0
      %878 = vmatprep.subr.bf16.mxu0 0
      %879 = vmatpush1.bf16.msra.mxu0 0
      %880 = vmatprep.subr.bf16.mxu0 0
      %881 = vmatpush1.bf16.msra.mxu0 0
      %882 = vmatprep.subr.bf16.mxu0 0
      %883 = vmatpush1.bf16.msra.mxu0 0
      %884 = vmatprep.subr.bf16.mxu0 0
      %885 = vmatpush1.bf16.msra.mxu0 0
      %886 = vmatprep.subr.bf16.mxu0 0
      %887 = vmatpush1.bf16.msra.mxu0 0
      %888 = vmatprep.subr.bf16.mxu0 0
      %889 = vmatpush1.bf16.msra.mxu0 0
      %890 = vmatprep.subr.bf16.mxu0 0
      %891 = vmatpush1.bf16.msra.mxu0 0
      %892 = vmatprep.subr.bf16.mxu0 0
      %893 = vmatpush1.bf16.msra.mxu0 0
      %894 = vmatprep.subr.bf16.mxu0 0
      %895 = vmatpush1.bf16.msra.mxu0 0
      %896 = vmatprep.subr.bf16.mxu0 0
      %897 = vmatpush1.bf16.msra.mxu0 0
      %898 = vmatprep.subr.bf16.mxu0 0
      %899 = vmatpush1.bf16.msra.mxu0 0
      %900 = vmatprep.mubr.bf16.mxu0 0
      %901 = vmatmul.mubr.bf16.gmra.mrb[0].mxu0 %v857
      %v902 = vpop.f32.mrb[0].mxu0
      %v903 = vadd.f32 0.0, %v902
      %v904 = vpop.f32.mrb[0].mxu0
      %v905 = vadd.f32 0.0, %v904
      %v906 = vpop.f32.mrb[0].mxu0
      %v907 = vpop.f32.mrb[0].mxu0
      %908 = vdwg.mxu0
      %909 = vmatprep.subr.bf16.mxu0 0
      %910 = vmatpush1.bf16.msra.mxu0 %v866
      %911 = vmatprep.subr.bf16.mxu0 0
      %912 = vmatpush1.bf16.msra.mxu0 0
      %913 = vmatprep.subr.bf16.mxu0 0
      %914 = vmatpush1.bf16.msra.mxu0 0
      %915 = vmatprep.subr.bf16.mxu0 0
      %916 = vmatpush1.bf16.msra.mxu0 0
      %917 = vmatprep.subr.bf16.mxu0 0
      %918 = vmatpush1.bf16.msra.mxu0 0
      %919 = vmatprep.subr.bf16.mxu0 0
      %920 = vmatpush1.bf16.msra.mxu0 0
      %921 = vmatprep.subr.bf16.mxu0 0
      %922 = vmatpush1.bf16.msra.mxu0 0
      %923 = vmatprep.subr.bf16.mxu0 0
      %924 = vmatpush1.bf16.msra.mxu0 0
      %925 = vmatprep.subr.bf16.mxu0 0
      %926 = vmatpush1.bf16.msra.mxu0 0
      %927 = vmatprep.subr.bf16.mxu0 0
      %928 = vmatpush1.bf16.msra.mxu0 0
      %929 = vmatprep.subr.bf16.mxu0 0
      %930 = vmatpush1.bf16.msra.mxu0 0
      %931 = vmatprep.subr.bf16.mxu0 0
      %932 = vmatpush1.bf16.msra.mxu0 0
      %933 = vmatprep.subr.bf16.mxu0 0
      %934 = vmatpush1.bf16.msra.mxu0 0
      %935 = vmatprep.subr.bf16.mxu0 0
      %936 = vmatpush1.bf16.msra.mxu0 0
      %937 = vmatprep.subr.bf16.mxu0 0
      %938 = vmatpush1.bf16.msra.mxu0 0
      %939 = vmatprep.subr.bf16.mxu0 0
      %940 = vmatpush1.bf16.msra.mxu0 0
      %941 = vmatprep.mubr.bf16.mxu0 0
      %942 = vmatmul.mubr.bf16.gmra.mrb[0].mxu0 %v857
      %v943 = vpop.f32.mrb[0].mxu0
      %v944 = vadd.f32 0.0, %v943
      %v945 = vpop.f32.mrb[0].mxu0
      %v946 = vpop.f32.mrb[0].mxu0
      %v947 = vpop.f32.mrb[0].mxu0
      %948 = vdwg.mxu0
      %v949 = vadd.f32 %v824, %v903
      %v950 = vadd.f32 %v825, %v905
      %v951 = vadd.f32 %v826, %v944
      %v952 = vld [vmem:[#allocation2] sm:$0x3f]
      %s953 = scalar_lea.vmem %s1, 16
      %v954 = vld [vmem:[%s953] sm:$0xf]
      %v956 = vcombine.high %v952, %v952
      %v958 = vunpack.c.l.s4 1983009808
      %v959 = vunpack.c.0.s8 %v958
      %v960 = vlaneseq
      %v961 = vshrl.u32 %v960, 7
      %v962 = vsub.s32 %v959, %v961
      %v963 = vrot.slane %v952, %v962
      %v965 = vunpack.c.l.s4 1983009808
      %v966 = vunpack.c.0.s8 %v965
      %v967 = vlaneseq
      %v968 = vshrl.u32 %v967, 7
      %v969 = vsub.s32 %v966, %v968
      %v970 = vrot.slane %v956, %v969
      %v971 = vcombine.high %v963, %v963
      %972 = vrot.lane.b32.xlu0 %v963, 109
      %v973 = vpop.permute.xlu0 %972
      %974 = vrot.lane.b32.xlu0 %v971, 109
      %v975 = vpop.permute.xlu0 %974
      %976 = vrot.lane.b32.xlu0 %v970, 109
      %v977 = vpop.permute.xlu0 %976
      %vm978 = vcmask 891904
      %v979 = vsel %vm978, %v973, %v975
      %v980 = vsel %vm978, %v975, %v977
      %v982 = vsel %vm514, %v954, 0
      %v985 = vsel %vm518, %v979, 0
      %v988 = vsel %vm518, %v980, 0
      %v991 = vsel %vm518, %v977, 0
      %993 = vmatprep.subr.bf16.mxu0 %v988
      %994 = vmatpush1.bf16.msra.mxu0 %v985
      %995 = vmatprep.subr.bf16.mxu0 0
      %996 = vmatpush1.bf16.msra.mxu0 0
      %997 = vmatprep.subr.bf16.mxu0 0
      %998 = vmatpush1.bf16.msra.mxu0 0
      %999 = vmatprep.subr.bf16.mxu0 0
      %1000 = vmatpush1.bf16.msra.mxu0 0
      %1001 = vmatprep.subr.bf16.mxu0 0
      %1002 = vmatpush1.bf16.msra.mxu0 0
      %1003 = vmatprep.subr.bf16.mxu0 0
      %1004 = vmatpush1.bf16.msra.mxu0 0
      %1005 = vmatprep.subr.bf16.mxu0 0
      %1006 = vmatpush1.bf16.msra.mxu0 0
      %1007 = vmatprep.subr.bf16.mxu0 0
      %1008 = vmatpush1.bf16.msra.mxu0 0
      %1009 = vmatprep.subr.bf16.mxu0 0
      %1010 = vmatpush1.bf16.msra.mxu0 0
      %1011 = vmatprep.subr.bf16.mxu0 0
      %1012 = vmatpush1.bf16.msra.mxu0 0
      %1013 = vmatprep.subr.bf16.mxu0 0
      %1014 = vmatpush1.bf16.msra.mxu0 0
      %1015 = vmatprep.subr.bf16.mxu0 0
      %1016 = vmatpush1.bf16.msra.mxu0 0
      %1017 = vmatprep.subr.bf16.mxu0 0
      %1018 = vmatpush1.bf16.msra.mxu0 0
      %1019 = vmatprep.subr.bf16.mxu0 0
      %1020 = vmatpush1.bf16.msra.mxu0 0
      %1021 = vmatprep.subr.bf16.mxu0 0
      %1022 = vmatpush1.bf16.msra.mxu0 0
      %1023 = vmatprep.subr.bf16.mxu0 0
      %1024 = vmatpush1.bf16.msra.mxu0 0
      %1025 = vmatprep.mubr.bf16.mxu0 0
      %1026 = vmatmul.mubr.bf16.gmra.mrb[0].mxu0 %v982
      %v1027 = vpop.f32.mrb[0].mxu0
      %v1028 = vadd.f32 0.0, %v1027
      %v1029 = vpop.f32.mrb[0].mxu0
      %v1030 = vadd.f32 0.0, %v1029
      %v1031 = vpop.f32.mrb[0].mxu0
      %v1032 = vpop.f32.mrb[0].mxu0
      %1033 = vdwg.mxu0
      %1034 = vmatprep.subr.bf16.mxu0 0
      %1035 = vmatpush1.bf16.msra.mxu0 %v991
      %1036 = vmatprep.subr.bf16.mxu0 0
      %1037 = vmatpush1.bf16.msra.mxu0 0
      %1038 = vmatprep.subr.bf16.mxu0 0
      %1039 = vmatpush1.bf16.msra.mxu0 0
      %1040 = vmatprep.subr.bf16.mxu0 0
      %1041 = vmatpush1.bf16.msra.mxu0 0
      %1042 = vmatprep.subr.bf16.mxu0 0
      %1043 = vmatpush1.bf16.msra.mxu0 0
      %1044 = vmatprep.subr.bf16.mxu0 0
      %1045 = vmatpush1.bf16.msra.mxu0 0
      %1046 = vmatprep.subr.bf16.mxu0 0
      %1047 = vmatpush1.bf16.msra.mxu0 0
      %1048 = vmatprep.subr.bf16.mxu0 0
      %1049 = vmatpush1.bf16.msra.mxu0 0
      %1050 = vmatprep.subr.bf16.mxu0 0
      %1051 = vmatpush1.bf16.msra.mxu0 0
      %1052 = vmatprep.subr.bf16.mxu0 0
      %1053 = vmatpush1.bf16.msra.mxu0 0
      %1054 = vmatprep.subr.bf16.mxu0 0
      %1055 = vmatpush1.bf16.msra.mxu0 0
      %1056 = vmatprep.subr.bf16.mxu0 0
      %1057 = vmatpush1.bf16.msra.mxu0 0
      %1058 = vmatprep.subr.bf16.mxu0 0
      %1059 = vmatpush1.bf16.msra.mxu0 0
      %1060 = vmatprep.subr.bf16.mxu0 0
      %1061 = vmatpush1.bf16.msra.mxu0 0
      %1062 = vmatprep.subr.bf16.mxu0 0
      %1063 = vmatpush1.bf16.msra.mxu0 0
      %1064 = vmatprep.subr.bf16.mxu0 0
      %1065 = vmatpush1.bf16.msra.mxu0 0
      %1066 = vmatprep.mubr.bf16.mxu0 0
      %1067 = vmatmul.mubr.bf16.gmra.mrb[0].mxu0 %v982
      %v1068 = vpop.f32.mrb[0].mxu0
      %v1069 = vadd.f32 0.0, %v1068
      %v1070 = vpop.f32.mrb[0].mxu0
      %v1071 = vpop.f32.mrb[0].mxu0
      %v1072 = vpop.f32.mrb[0].mxu0
      %1073 = vdwg.mxu0
      %v1074 = vadd.f32 %v949, %v1028
      %v1075 = vadd.f32 %v950, %v1030
      %v1076 = vadd.f32 %v951, %v1069
      %v1077 = vld [vmem:[#allocation2] sm:$0x3f]
      %s1078 = scalar_lea.vmem %s1, 20
      %v1079 = vld [vmem:[%s1078] sm:$0xf]
      %v1081 = vcombine.high %v1077, %v1077
      %v1083 = vunpack.c.l.s4 1983009808
      %v1084 = vunpack.c.0.s8 %v1083
      %v1085 = vlaneseq
      %v1086 = vshrl.u32 %v1085, 7
      %v1087 = vsub.s32 %v1084, %v1086
      %v1088 = vrot.slane %v1077, %v1087
      %v1090 = vunpack.c.l.s4 1983009808
      %v1091 = vunpack.c.0.s8 %v1090
      %v1092 = vlaneseq
      %v1093 = vshrl.u32 %v1092, 7
      %v1094 = vsub.s32 %v1091, %v1093
      %v1095 = vrot.slane %v1081, %v1094
      %v1096 = vcombine.high %v1088, %v1088
      %1097 = vrot.lane.b32.xlu0 %v1088, 108
      %v1098 = vpop.permute.xlu0 %1097
      %1099 = vrot.lane.b32.xlu0 %v1096, 108
      %v1100 = vpop.permute.xlu0 %1099
      %1101 = vrot.lane.b32.xlu0 %v1095, 108
      %v1102 = vpop.permute.xlu0 %1101
      %vm1103 = vcmask 883712
      %v1104 = vsel %vm1103, %v1098, %v1100
      %v1105 = vsel %vm1103, %v1100, %v1102
      %v1107 = vsel %vm514, %v1079, 0
      %v1110 = vsel %vm518, %v1104, 0
      %v1113 = vsel %vm518, %v1105, 0
      %v1116 = vsel %vm518, %v1102, 0
      %1118 = vmatprep.subr.bf16.mxu0 %v1113
      %1119 = vmatpush1.bf16.msra.mxu0 %v1110
      %1120 = vmatprep.subr.bf16.mxu0 0
      %1121 = vmatpush1.bf16.msra.mxu0 0
      %1122 = vmatprep.subr.bf16.mxu0 0
      %1123 = vmatpush1.bf16.msra.mxu0 0
      %1124 = vmatprep.subr.bf16.mxu0 0
      %1125 = vmatpush1.bf16.msra.mxu0 0
      %1126 = vmatprep.subr.bf16.mxu0 0
      %1127 = vmatpush1.bf16.msra.mxu0 0
      %1128 = vmatprep.subr.bf16.mxu0 0
      %1129 = vmatpush1.bf16.msra.mxu0 0
      %1130 = vmatprep.subr.bf16.mxu0 0
      %1131 = vmatpush1.bf16.msra.mxu0 0
      %1132 = vmatprep.subr.bf16.mxu0 0
      %1133 = vmatpush1.bf16.msra.mxu0 0
      %1134 = vmatprep.subr.bf16.mxu0 0
      %1135 = vmatpush1.bf16.msra.mxu0 0
      %1136 = vmatprep.subr.bf16.mxu0 0
      %1137 = vmatpush1.bf16.msra.mxu0 0
      %1138 = vmatprep.subr.bf16.mxu0 0
      %1139 = vmatpush1.bf16.msra.mxu0 0
      %1140 = vmatprep.subr.bf16.mxu0 0
      %1141 = vmatpush1.bf16.msra.mxu0 0
      %1142 = vmatprep.subr.bf16.mxu0 0
      %1143 = vmatpush1.bf16.msra.mxu0 0
      %1144 = vmatprep.subr.bf16.mxu0 0
      %1145 = vmatpush1.bf16.msra.mxu0 0
      %1146 = vmatprep.subr.bf16.mxu0 0
      %1147 = vmatpush1.bf16.msra.mxu0 0
      %1148 = vmatprep.subr.bf16.mxu0 0
      %1149 = vmatpush1.bf16.msra.mxu0 0
      %1150 = vmatprep.mubr.bf16.mxu0 0
      %1151 = vmatmul.mubr.bf16.gmra.mrb[0].mxu0 %v1107
      %v1152 = vpop.f32.mrb[0].mxu0
      %v1153 = vadd.f32 0.0, %v1152
      %v1154 = vpop.f32.mrb[0].mxu0
      %v1155 = vadd.f32 0.0, %v1154
      %v1156 = vpop.f32.mrb[0].mxu0
      %v1157 = vpop.f32.mrb[0].mxu0
      %1158 = vdwg.mxu0
      %1159 = vmatprep.subr.bf16.mxu0 0
      %1160 = vmatpush1.bf16.msra.mxu0 %v1116
      %1161 = vmatprep.subr.bf16.mxu0 0
      %1162 = vmatpush1.bf16.msra.mxu0 0
      %1163 = vmatprep.subr.bf16.mxu0 0
      %1164 = vmatpush1.bf16.msra.mxu0 0
      %1165 = vmatprep.subr.bf16.mxu0 0
      %1166 = vmatpush1.bf16.msra.mxu0 0
      %1167 = vmatprep.subr.bf16.mxu0 0
      %1168 = vmatpush1.bf16.msra.mxu0 0
      %1169 = vmatprep.subr.bf16.mxu0 0
      %1170 = vmatpush1.bf16.msra.mxu0 0
      %1171 = vmatprep.subr.bf16.mxu0 0
      %1172 = vmatpush1.bf16.msra.mxu0 0
      %1173 = vmatprep.subr.bf16.mxu0 0
      %1174 = vmatpush1.bf16.msra.mxu0 0
      %1175 = vmatprep.subr.bf16.mxu0 0
      %1176 = vmatpush1.bf16.msra.mxu0 0
      %1177 = vmatprep.subr.bf16.mxu0 0
      %1178 = vmatpush1.bf16.msra.mxu0 0
      %1179 = vmatprep.subr.bf16.mxu0 0
      %1180 = vmatpush1.bf16.msra.mxu0 0
      %1181 = vmatprep.subr.bf16.mxu0 0
      %1182 = vmatpush1.bf16.msra.mxu0 0
      %1183 = vmatprep.subr.bf16.mxu0 0
      %1184 = vmatpush1.bf16.msra.mxu0 0
      %1185 = vmatprep.subr.bf16.mxu0 0
      %1186 = vmatpush1.bf16.msra.mxu0 0
      %1187 = vmatprep.subr.bf16.mxu0 0
      %1188 = vmatpush1.bf16.msra.mxu0 0
      %1189 = vmatprep.subr.bf16.mxu0 0
      %1190 = vmatpush1.bf16.msra.mxu0 0
      %1191 = vmatprep.mubr.bf16.mxu0 0
      %1192 = vmatmul.mubr.bf16.gmra.mrb[0].mxu0 %v1107
      %v1193 = vpop.f32.mrb[0].mxu0
      %v1194 = vadd.f32 0.0, %v1193
      %v1195 = vpop.f32.mrb[0].mxu0
      %v1196 = vpop.f32.mrb[0].mxu0
      %v1197 = vpop.f32.mrb[0].mxu0
      %1198 = vdwg.mxu0
      %v1199 = vadd.f32 %v1074, %v1153
      %v1200 = vadd.f32 %v1075, %v1155
      %v1201 = vadd.f32 %v1076, %v1194
      %v1202 = vld [vmem:[#allocation2] sm:$0x3f]
      %s1203 = scalar_lea.vmem %s1, 24
      %v1204 = vld [vmem:[%s1203] sm:$0xf]
      %v1206 = vcombine.high %v1202, %v1202
      %v1208 = vunpack.c.l.s4 1983009808
      %v1209 = vunpack.c.0.s8 %v1208
      %v1210 = vlaneseq
      %v1211 = vshrl.u32 %v1210, 7
      %v1212 = vsub.s32 %v1209, %v1211
      %v1213 = vrot.slane %v1202, %v1212
      %v1215 = vunpack.c.l.s4 1983009808
      %v1216 = vunpack.c.0.s8 %v1215
      %v1217 = vlaneseq
      %v1218 = vshrl.u32 %v1217, 7
      %v1219 = vsub.s32 %v1216, %v1218
      %v1220 = vrot.slane %v1206, %v1219
      %v1221 = vcombine.high %v1213, %v1213
      %1222 = vrot.lane.b32.xlu0 %v1213, 92
      %v1223 = vpop.permute.xlu0 %1222
      %1224 = vrot.lane.b32.xlu0 %v1221, 92
      %v1225 = vpop.permute.xlu0 %1224
      %1226 = vrot.lane.b32.xlu0 %v1220, 92
      %v1227 = vpop.permute.xlu0 %1226
      %vm1228 = vcmask 752640
      %v1229 = vsel %vm1228, %v1223, %v1225
      %v1230 = vsel %vm1228, %v1225, %v1227
      %v1232 = vsel %vm514, %v1204, 0
      %v1235 = vsel %vm518, %v1229, 0
      %v1238 = vsel %vm518, %v1230, 0
      %v1241 = vsel %vm518, %v1227, 0
      %1243 = vmatprep.subr.bf16.mxu0 %v1238
      %1244 = vmatpush1.bf16.msra.mxu0 %v1235
      %1245 = vmatprep.subr.bf16.mxu0 0
      %1246 = vmatpush1.bf16.msra.mxu0 0
      %1247 = vmatprep.subr.bf16.mxu0 0
      %1248 = vmatpush1.bf16.msra.mxu0 0
      %1249 = vmatprep.subr.bf16.mxu0 0
      %1250 = vmatpush1.bf16.msra.mxu0 0
      %1251 = vmatprep.subr.bf16.mxu0 0
      %1252 = vmatpush1.bf16.msra.mxu0 0
      %1253 = vmatprep.subr.bf16.mxu0 0
      %1254 = vmatpush1.bf16.msra.mxu0 0
      %1255 = vmatprep.subr.bf16.mxu0 0
      %1256 = vmatpush1.bf16.msra.mxu0 0
      %1257 = vmatprep.subr.bf16.mxu0 0
      %1258 = vmatpush1.bf16.msra.mxu0 0
      %1259 = vmatprep.subr.bf16.mxu0 0
      %1260 = vmatpush1.bf16.msra.mxu0 0
      %1261 = vmatprep.subr.bf16.mxu0 0
      %1262 = vmatpush1.bf16.msra.mxu0 0
      %1263 = vmatprep.subr.bf16.mxu0 0
      %1264 = vmatpush1.bf16.msra.mxu0 0
      %1265 = vmatprep.subr.bf16.mxu0 0
      %1266 = vmatpush1.bf16.msra.mxu0 0
      %1267 = vmatprep.subr.bf16.mxu0 0
      %1268 = vmatpush1.bf16.msra.mxu0 0
      %1269 = vmatprep.subr.bf16.mxu0 0
      %1270 = vmatpush1.bf16.msra.mxu0 0
      %1271 = vmatprep.subr.bf16.mxu0 0
      %1272 = vmatpush1.bf16.msra.mxu0 0
      %1273 = vmatprep.subr.bf16.mxu0 0
      %1274 = vmatpush1.bf16.msra.mxu0 0
      %1275 = vmatprep.mubr.bf16.mxu0 0
      %1276 = vmatmul.mubr.bf16.gmra.mrb[0].mxu0 %v1232
      %v1277 = vpop.f32.mrb[0].mxu0
      %v1278 = vadd.f32 0.0, %v1277
      %v1279 = vpop.f32.mrb[0].mxu0
      %v1280 = vadd.f32 0.0, %v1279
      %v1281 = vpop.f32.mrb[0].mxu0
      %v1282 = vpop.f32.mrb[0].mxu0
      %1283 = vdwg.mxu0
      %1284 = vmatprep.subr.bf16.mxu0 0
      %1285 = vmatpush1.bf16.msra.mxu0 %v1241
      %1286 = vmatprep.subr.bf16.mxu0 0
      %1287 = vmatpush1.bf16.msra.mxu0 0
      %1288 = vmatprep.subr.bf16.mxu0 0
      %1289 = vmatpush1.bf16.msra.mxu0 0
      %1290 = vmatprep.subr.bf16.mxu0 0
      %1291 = vmatpush1.bf16.msra.mxu0 0
      %1292 = vmatprep.subr.bf16.mxu0 0
      %1293 = vmatpush1.bf16.msra.mxu0 0
      %1294 = vmatprep.subr.bf16.mxu0 0
      %1295 = vmatpush1.bf16.msra.mxu0 0
      %1296 = vmatprep.subr.bf16.mxu0 0
      %1297 = vmatpush1.bf16.msra.mxu0 0
      %1298 = vmatprep.subr.bf16.mxu0 0
      %1299 = vmatpush1.bf16.msra.mxu0 0
      %1300 = vmatprep.subr.bf16.mxu0 0
      %1301 = vmatpush1.bf16.msra.mxu0 0
      %1302 = vmatprep.subr.bf16.mxu0 0
      %1303 = vmatpush1.bf16.msra.mxu0 0
      %1304 = vmatprep.subr.bf16.mxu0 0
      %1305 = vmatpush1.bf16.msra.mxu0 0
      %1306 = vmatprep.subr.bf16.mxu0 0
      %1307 = vmatpush1.bf16.msra.mxu0 0
      %1308 = vmatprep.subr.bf16.mxu0 0
      %1309 = vmatpush1.bf16.msra.mxu0 0
      %1310 = vmatprep.subr.bf16.mxu0 0
      %1311 = vmatpush1.bf16.msra.mxu0 0
      %1312 = vmatprep.subr.bf16.mxu0 0
      %1313 = vmatpush1.bf16.msra.mxu0 0
      %1314 = vmatprep.subr.bf16.mxu0 0
      %1315 = vmatpush1.bf16.msra.mxu0 0
      %1316 = vmatprep.mubr.bf16.mxu0 0
      %1317 = vmatmul.mubr.bf16.gmra.mrb[0].mxu0 %v1232
      %v1318 = vpop.f32.mrb[0].mxu0
      %v1319 = vadd.f32 0.0, %v1318
      %v1320 = vpop.f32.mrb[0].mxu0
      %v1321 = vpop.f32.mrb[0].mxu0
      %v1322 = vpop.f32.mrb[0].mxu0
      %1323 = vdwg.mxu0
      %v1324 = vadd.f32 %v1199, %v1278
      %v1325 = vadd.f32 %v1200, %v1280
      %v1326 = vadd.f32 %v1201, %v1319
      %v1327 = vld [vmem:[#allocation2] sm:$0x3f]
      %s1328 = scalar_lea.vmem %s1, 28
      %v1329 = vld [vmem:[%s1328] sm:$0xf]
      %v1331 = vcombine.high %v1327, %v1327
      %v1333 = vunpack.c.l.s4 1983009808
      %v1334 = vunpack.c.0.s8 %v1333
      %v1335 = vlaneseq
      %v1336 = vshrl.u32 %v1335, 7
      %v1337 = vsub.s32 %v1334, %v1336
      %v1338 = vrot.slane %v1327, %v1337
      %v1340 = vunpack.c.l.s4 1983009808
      %v1341 = vunpack.c.0.s8 %v1340
      %v1342 = vlaneseq
      %v1343 = vshrl.u32 %v1342, 7
      %v1344 = vsub.s32 %v1341, %v1343
      %v1345 = vrot.slane %v1331, %v1344
      %v1346 = vcombine.high %v1338, %v1338
      %1347 = vrot.lane.b32.xlu0 %v1338, 91
      %v1348 = vpop.permute.xlu0 %1347
      %1349 = vrot.lane.b32.xlu0 %v1346, 91
      %v1350 = vpop.permute.xlu0 %1349
      %1351 = vrot.lane.b32.xlu0 %v1345, 91
      %v1352 = vpop.permute.xlu0 %1351
      %vm1353 = vcmask 744448
      %v1354 = vsel %vm1353, %v1348, %v1350
      %v1355 = vsel %vm1353, %v1350, %v1352
      %v1357 = vsel %vm514, %v1329, 0
      %v1360 = vsel %vm518, %v1354, 0
      %v1363 = vsel %vm518, %v1355, 0
      %v1366 = vsel %vm518, %v1352, 0
      %1368 = vmatprep.subr.bf16.mxu0 %v1363
      %1369 = vmatpush1.bf16.msra.mxu0 %v1360
      %1370 = vmatprep.subr.bf16.mxu0 0
      %1371 = vmatpush1.bf16.msra.mxu0 0
      %1372 = vmatprep.subr.bf16.mxu0 0
      %1373 = vmatpush1.bf16.msra.mxu0 0
      %1374 = vmatprep.subr.bf16.mxu0 0
      %1375 = vmatpush1.bf16.msra.mxu0 0
      %1376 = vmatprep.subr.bf16.mxu0 0
      %1377 = vmatpush1.bf16.msra.mxu0 0
      %1378 = vmatprep.subr.bf16.mxu0 0
      %1379 = vmatpush1.bf16.msra.mxu0 0
      %1380 = vmatprep.subr.bf16.mxu0 0
      %1381 = vmatpush1.bf16.msra.mxu0 0
      %1382 = vmatprep.subr.bf16.mxu0 0
      %1383 = vmatpush1.bf16.msra.mxu0 0
      %1384 = vmatprep.subr.bf16.mxu0 0
      %1385 = vmatpush1.bf16.msra.mxu0 0
      %1386 = vmatprep.subr.bf16.mxu0 0
      %1387 = vmatpush1.bf16.msra.mxu0 0
      %1388 = vmatprep.subr.bf16.mxu0 0
      %1389 = vmatpush1.bf16.msra.mxu0 0
      %1390 = vmatprep.subr.bf16.mxu0 0
      %1391 = vmatpush1.bf16.msra.mxu0 0
      %1392 = vmatprep.subr.bf16.mxu0 0
      %1393 = vmatpush1.bf16.msra.mxu0 0
      %1394 = vmatprep.subr.bf16.mxu0 0
      %1395 = vmatpush1.bf16.msra.mxu0 0
      %1396 = vmatprep.subr.bf16.mxu0 0
      %1397 = vmatpush1.bf16.msra.mxu0 0
      %1398 = vmatprep.subr.bf16.mxu0 0
      %1399 = vmatpush1.bf16.msra.mxu0 0
      %1400 = vmatprep.mubr.bf16.mxu0 0
      %1401 = vmatmul.mubr.bf16.gmra.mrb[0].mxu0 %v1357
      %v1402 = vpop.f32.mrb[0].mxu0
      %v1403 = vadd.f32 0.0, %v1402
      %v1404 = vpop.f32.mrb[0].mxu0
      %v1405 = vadd.f32 0.0, %v1404
      %v1406 = vpop.f32.mrb[0].mxu0
      %v1407 = vpop.f32.mrb[0].mxu0
      %1408 = vdwg.mxu0
      %1409 = vmatprep.subr.bf16.mxu0 0
      %1410 = vmatpush1.bf16.msra.mxu0 %v1366
      %1411 = vmatprep.subr.bf16.mxu0 0
      %1412 = vmatpush1.bf16.msra.mxu0 0
      %1413 = vmatprep.subr.bf16.mxu0 0
      %1414 = vmatpush1.bf16.msra.mxu0 0
      %1415 = vmatprep.subr.bf16.mxu0 0
      %1416 = vmatpush1.bf16.msra.mxu0 0
      %1417 = vmatprep.subr.bf16.mxu0 0
      %1418 = vmatpush1.bf16.msra.mxu0 0
      %1419 = vmatprep.subr.bf16.mxu0 0
      %1420 = vmatpush1.bf16.msra.mxu0 0
      %1421 = vmatprep.subr.bf16.mxu0 0
      %1422 = vmatpush1.bf16.msra.mxu0 0
      %1423 = vmatprep.subr.bf16.mxu0 0
      %1424 = vmatpush1.bf16.msra.mxu0 0
      %1425 = vmatprep.subr.bf16.mxu0 0
      %1426 = vmatpush1.bf16.msra.mxu0 0
      %1427 = vmatprep.subr.bf16.mxu0 0
      %1428 = vmatpush1.bf16.msra.mxu0 0
      %1429 = vmatprep.subr.bf16.mxu0 0
      %1430 = vmatpush1.bf16.msra.mxu0 0
      %1431 = vmatprep.subr.bf16.mxu0 0
      %1432 = vmatpush1.bf16.msra.mxu0 0
      %1433 = vmatprep.subr.bf16.mxu0 0
      %1434 = vmatpush1.bf16.msra.mxu0 0
      %1435 = vmatprep.subr.bf16.mxu0 0
      %1436 = vmatpush1.bf16.msra.mxu0 0
      %1437 = vmatprep.subr.bf16.mxu0 0
      %1438 = vmatpush1.bf16.msra.mxu0 0
      %1439 = vmatprep.subr.bf16.mxu0 0
      %1440 = vmatpush1.bf16.msra.mxu0 0
      %1441 = vmatprep.mubr.bf16.mxu0 0
      %1442 = vmatmul.mubr.bf16.gmra.mrb[0].mxu0 %v1357
      %v1443 = vpop.f32.mrb[0].mxu0
      %v1444 = vadd.f32 0.0, %v1443
      %v1445 = vpop.f32.mrb[0].mxu0
      %v1446 = vpop.f32.mrb[0].mxu0
      %v1447 = vpop.f32.mrb[0].mxu0
      %1448 = vdwg.mxu0
      %v1449 = vadd.f32 %v1324, %v1403
      %v1450 = vadd.f32 %v1325, %v1405
      %v1451 = vadd.f32 %v1326, %v1444
      %v1452 = vld [vmem:[#allocation2] sm:$0x3f]
      %s1453 = scalar_lea.vmem %s1, 32
      %v1454 = vld [vmem:[%s1453] sm:$0xf]
      %v1456 = vcombine.high %v1452, %v1452
      %v1458 = vunpack.c.l.s4 1983009808
      %v1459 = vunpack.c.0.s8 %v1458
      %v1460 = vlaneseq
      %v1461 = vshrl.u32 %v1460, 7
      %v1462 = vsub.s32 %v1459, %v1461
      %v1463 = vrot.slane %v1452, %v1462
      %v1465 = vunpack.c.l.s4 1983009808
      %v1466 = vunpack.c.0.s8 %v1465
      %v1467 = vlaneseq
      %v1468 = vshrl.u32 %v1467, 7
      %v1469 = vsub.s32 %v1466, %v1468
      %v1470 = vrot.slane %v1456, %v1469
      %v1471 = vcombine.high %v1463, %v1463
      %1472 = vrot.lane.b32.xlu0 %v1463, 90
      %v1473 = vpop.permute.xlu0 %1472
      %1474 = vrot.lane.b32.xlu0 %v1471, 90
      %v1475 = vpop.permute.xlu0 %1474
      %1476 = vrot.lane.b32.xlu0 %v1470, 90
      %v1477 = vpop.permute.xlu0 %1476
      %vm1478 = vcmask 736256
      %v1479 = vsel %vm1478, %v1473, %v1475
      %v1480 = vsel %vm1478, %v1475, %v1477
      %v1482 = vsel %vm514, %v1454, 0
      %v1485 = vsel %vm518, %v1479, 0
      %v1488 = vsel %vm518, %v1480, 0
      %v1491 = vsel %vm518, %v1477, 0
      %1493 = vmatprep.subr.bf16.mxu0 %v1488
      %1494 = vmatpush1.bf16.msra.mxu0 %v1485
      %1495 = vmatprep.subr.bf16.mxu0 0
      %1496 = vmatpush1.bf16.msra.mxu0 0
      %1497 = vmatprep.subr.bf16.mxu0 0
      %1498 = vmatpush1.bf16.msra.mxu0 0
      %1499 = vmatprep.subr.bf16.mxu0 0
      %1500 = vmatpush1.bf16.msra.mxu0 0
      %1501 = vmatprep.subr.bf16.mxu0 0
      %1502 = vmatpush1.bf16.msra.mxu0 0
      %1503 = vmatprep.subr.bf16.mxu0 0
      %1504 = vmatpush1.bf16.msra.mxu0 0
      %1505 = vmatprep.subr.bf16.mxu0 0
      %1506 = vmatpush1.bf16.msra.mxu0 0
      %1507 = vmatprep.subr.bf16.mxu0 0
      %1508 = vmatpush1.bf16.msra.mxu0 0
      %1509 = vmatprep.subr.bf16.mxu0 0
      %1510 = vmatpush1.bf16.msra.mxu0 0
      %1511 = vmatprep.subr.bf16.mxu0 0
      %1512 = vmatpush1.bf16.msra.mxu0 0
      %1513 = vmatprep.subr.bf16.mxu0 0
      %1514 = vmatpush1.bf16.msra.mxu0 0
      %1515 = vmatprep.subr.bf16.mxu0 0
      %1516 = vmatpush1.bf16.msra.mxu0 0
      %1517 = vmatprep.subr.bf16.mxu0 0
      %1518 = vmatpush1.bf16.msra.mxu0 0
      %1519 = vmatprep.subr.bf16.mxu0 0
      %1520 = vmatpush1.bf16.msra.mxu0 0
      %1521 = vmatprep.subr.bf16.mxu0 0
      %1522 = vmatpush1.bf16.msra.mxu0 0
      %1523 = vmatprep.subr.bf16.mxu0 0
      %1524 = vmatpush1.bf16.msra.mxu0 0
      %1525 = vmatprep.mubr.bf16.mxu0 0
      %1526 = vmatmul.mubr.bf16.gmra.mrb[0].mxu0 %v1482
      %v1527 = vpop.f32.mrb[0].mxu0
      %v1528 = vadd.f32 0.0, %v1527
      %v1529 = vpop.f32.mrb[0].mxu0
      %v1530 = vadd.f32 0.0, %v1529
      %v1531 = vpop.f32.mrb[0].mxu0
      %v1532 = vpop.f32.mrb[0].mxu0
      %1533 = vdwg.mxu0
      %1534 = vmatprep.subr.bf16.mxu0 0
      %1535 = vmatpush1.bf16.msra.mxu0 %v1491
      %1536 = vmatprep.subr.bf16.mxu0 0
      %1537 = vmatpush1.bf16.msra.mxu0 0
      %1538 = vmatprep.subr.bf16.mxu0 0
      %1539 = vmatpush1.bf16.msra.mxu0 0
      %1540 = vmatprep.subr.bf16.mxu0 0
      %1541 = vmatpush1.bf16.msra.mxu0 0
      %1542 = vmatprep.subr.bf16.mxu0 0
      %1543 = vmatpush1.bf16.msra.mxu0 0
      %1544 = vmatprep.subr.bf16.mxu0 0
      %1545 = vmatpush1.bf16.msra.mxu0 0
      %1546 = vmatprep.subr.bf16.mxu0 0
      %1547 = vmatpush1.bf16.msra.mxu0 0
      %1548 = vmatprep.subr.bf16.mxu0 0
      %1549 = vmatpush1.bf16.msra.mxu0 0
      %1550 = vmatprep.subr.bf16.mxu0 0
      %1551 = vmatpush1.bf16.msra.mxu0 0
      %1552 = vmatprep.subr.bf16.mxu0 0
      %1553 = vmatpush1.bf16.msra.mxu0 0
      %1554 = vmatprep.subr.bf16.mxu0 0
      %1555 = vmatpush1.bf16.msra.mxu0 0
      %1556 = vmatprep.subr.bf16.mxu0 0
      %1557 = vmatpush1.bf16.msra.mxu0 0
      %1558 = vmatprep.subr.bf16.mxu0 0
      %1559 = vmatpush1.bf16.msra.mxu0 0
      %1560 = vmatprep.subr.bf16.mxu0 0
      %1561 = vmatpush1.bf16.msra.mxu0 0
      %1562 = vmatprep.subr.bf16.mxu0 0
      %1563 = vmatpush1.bf16.msra.mxu0 0
      %1564 = vmatprep.subr.bf16.mxu0 0
      %1565 = vmatpush1.bf16.msra.mxu0 0
      %1566 = vmatprep.mubr.bf16.mxu0 0
      %1567 = vmatmul.mubr.bf16.gmra.mrb[0].mxu0 %v1482
      %v1568 = vpop.f32.mrb[0].mxu0
      %v1569 = vadd.f32 0.0, %v1568
      %v1570 = vpop.f32.mrb[0].mxu0
      %v1571 = vpop.f32.mrb[0].mxu0
      %v1572 = vpop.f32.mrb[0].mxu0
      %1573 = vdwg.mxu0
      %v1574 = vadd.f32 %v1449, %v1528
      %v1575 = vadd.f32 %v1450, %v1530
      %v1576 = vadd.f32 %v1451, %v1569
      %v1577 = vld [vmem:[%s2] sm:$0xff]
      %1579 = vset.pattern.permute.xlu0 0
      %1580 = vperm.xlu0 %1579, %v1577
      %v1581 = vpop.permute.xlu0 %1580
      %v1583 = vadd.f32 %v1574, %v1581
      %v1584 = vadd.f32 %v1575, %v1581
      %v1585 = vadd.f32 %v1576, %v1581
      %s1586 = sld [smem:[#allocation3]]
      %vm1587 = vcmp.ge.f32.partialorder %v1583, 0.0
      %vm1588 = vcmp.ge.f32.partialorder %v1584, 0.0
      %vm1589 = vcmp.ge.f32.partialorder %v1585, 0.0
      %v1590 = vstv %s1586
      %v1591 = vmul.f32 %v1590, %v1583
      %v1592 = vmul.f32 %v1590, %v1584
      %v1593 = vmul.f32 %v1590, %v1585
      %v1594 = vsel %vm1587, %v1583, %v1591
      %v1595 = vsel %vm1588, %v1584, %v1592
      %v1596 = vsel %vm1589, %v1585, %v1593
      %vm1597 = vcmask 130048
      %1598 = vst.msk [vmem:[%s198] sm:$0xff] %vm1597, %v1594
      %1600 = vrot.lane.b32.xlu0 %v1594, 126
      %v1601 = vpop.permute.xlu0 %1600
      %vm1603 = vcmask 261248
      %1604 = vst.msk [vmem:[%s198] sm:$0xff] %vm1603, %v1601
      %1605 = vrot.lane.b32.xlu0 %v1594, 124
      %v1606 = vpop.permute.xlu0 %1605
      %vm1608 = vcmask 392448
      %1609 = vst.msk [vmem:[%s198] sm:$0xff] %vm1608, %v1606
      %1610 = vrot.lane.b32.xlu0 %v1594, 122
      %v1611 = vpop.permute.xlu0 %1610
      %vm1613 = vcmask 523648
      %1614 = vst.msk [vmem:[%s198] sm:$0xff] %vm1613, %v1611
      %1615 = vrot.lane.b32.xlu0 %v1594, 120
      %v1616 = vpop.permute.xlu0 %1615
      %vm1618 = vcmask 654848
      %1619 = vst.msk [vmem:[%s198] sm:$0xff] %vm1618, %v1616
      %1620 = vrot.lane.b32.xlu0 %v1594, 118
      %v1621 = vpop.permute.xlu0 %1620
      %vm1623 = vcmask 786048
      %1624 = vst.msk [vmem:[%s198] sm:$0xff] %vm1623, %v1621
      %1625 = vrot.lane.b32.xlu0 %v1594, 116
      %v1626 = vpop.permute.xlu0 %1625
      %vm1628 = vcmask 917248
      %1629 = vst.msk [vmem:[%s198] sm:$0xff] %vm1628, %v1626
      %1631 = vrot.lane.b32.xlu0 %v1594, 114
      %v1632 = vpop.permute.xlu0 %1631
      %1633 = vrot.lane.b32.xlu0 %v1595, 114
      %v1634 = vpop.permute.xlu0 %1633
      %vm1635 = vcmask 932864
      %v1636 = vsel %vm1635, %v1632, %v1634
      %vm1638 = vcmask 1048448
      %1639 = vst.msk [vmem:[%s198] sm:$0xff] %vm1638, %v1636
      %1640 = vrot.lane.b32.xlu0 %v1595, 112
      %v1641 = vpop.permute.xlu0 %1640
      %1643 = vst.msk [vmem:[%s198 + $0x8] sm:$0xff] %vm1597, %v1641
      %1644 = vrot.lane.b32.xlu0 %v1595, 110
      %v1645 = vpop.permute.xlu0 %1644
      %1647 = vst.msk [vmem:[%s198 + $0x8] sm:$0xff] %vm1603, %v1645
      %1648 = vrot.lane.b32.xlu0 %v1595, 108
      %v1649 = vpop.permute.xlu0 %1648
      %1651 = vst.msk [vmem:[%s198 + $0x8] sm:$0xff] %vm1608, %v1649
      %1652 = vrot.lane.b32.xlu0 %v1595, 106
      %v1653 = vpop.permute.xlu0 %1652
      %1655 = vst.msk [vmem:[%s198 + $0x8] sm:$0xff] %vm1613, %v1653
      %1656 = vrot.lane.b32.xlu0 %v1595, 104
      %v1657 = vpop.permute.xlu0 %1656
      %1659 = vst.msk [vmem:[%s198 + $0x8] sm:$0xff] %vm1618, %v1657
      %1660 = vrot.lane.b32.xlu0 %v1595, 102
      %v1661 = vpop.permute.xlu0 %1660
      %1663 = vst.msk [vmem:[%s198 + $0x8] sm:$0xff] %vm1623, %v1661
      %1665 = vrot.lane.b32.xlu0 %v1595, 100
      %v1666 = vpop.permute.xlu0 %1665
      %1667 = vrot.lane.b32.xlu0 %v1596, 100
      %v1668 = vpop.permute.xlu0 %1667
      %vm1669 = vcmask 818176
      %v1670 = vsel %vm1669, %v1666, %v1668
      %1672 = vst.msk [vmem:[%s198 + $0x8] sm:$0xff] %vm1628, %v1670
      %1673 = vrot.lane.b32.xlu0 %v1596, 98
      %v1674 = vpop.permute.xlu0 %1673
      %1676 = vst.msk [vmem:[%s198 + $0x8] sm:$0xff] %vm1638, %v1674
      %p1677 = scmp.lt.s32.totalorder %s16, 1
      %s1678 = scalar_select %p1677, %s16, 1
      %s1679 = smul.addr %s1678, 2
      %s1680 = smul.addr %s1679, 8
      %s1681 = scalar_lea.vmem %s4, %s1680
      // Predicated region
      $region37: #{conv_block.1} parent=35 // pred_check
        %p1682 = pneg %p123
      $region38: #{conv_block.1} parent=35 // pred_check_branch
        %1684 = sbr.rel (%p1682) target = $region40
      $region39: #{conv_block.1} parent=35 // pred_region
        _
      $region40: #{conv_block.1} parent=35 // pred_fallthru
        _
    $region36: #{conv_block.1} parent=5 // pred_fallthru
      _
    %p1685 = scmp.le.s32.totalorder 2, %s11
    // Predicated region
    $region41: #{conv_block.1} parent=5 // pred_check
      %p1686 = pneg %p1685
    $region42: #{conv_block.1} parent=5 // pred_check_branch
      %1688 = sbr.rel (%p1686) target = $region44
    $region43: #{conv_block.1} parent=5 // pred_region
      %s1689 = ssub.s32 %s11, 2
      // Predicated region
      $region45: #{conv_block.1} parent=43 // pred_check
        %p1690 = pneg %p129
      $region46: #{conv_block.1} parent=43 // pred_check_branch
        %1692 = sbr.rel (%p1690) target = $region48
      $region47: #{conv_block.1} parent=43 // pred_region
        %p1693 = scmp.lt.s32.totalorder %s17, 1
        %s1694 = scalar_select %p1693, %s17, 1
        %s1695 = smul.addr %s1694, 2
        %s1696 = smul.addr %s1695, 8
        %s1697 = scalar_lea.vmem %s4, %s1696
      $region48: #{conv_block.1} parent=43 // pred_fallthru
        _
    $region44: #{conv_block.1} parent=5 // pred_fallthru
      _
  $region6: #{conv_block.1} parent=0 // loop_footer
    %s15 = sadd.s32 1, %s11
  $region7: #{conv_block.1} parent=0 // loop_footer_branch
    %10 = sbr.rel target = $region3
  $region8: #{conv_block.1} parent=0 // loop_exit
    _

</llo_original>
